<compile_context>
chip_gen: v5e
topology: v5e:2x2
jax: 0.10.0
libtpu: 0.0.40
codegen_flags: <defaults>
</compile_context>

<pallas_src>
import jax
import jax.numpy as jnp
import numpy as np
from jax.experimental import pallas as pl
from jax.experimental.pallas import tpu as pltpu

EPS = 1e-5      # PyTorch BatchNorm default eps
LANE = 128      # lane-dense channel padding


# ----------------------------- Pallas kernel -------------------------------

def _encoder_kernel(x_ref, w1_ref, b1_ref,
                    s2_ref, w2_ref, b2_ref,
                    s3_ref, w3_ref, b3_ref,
                    s4_ref, w4_ref, b4_ref,
                    wh_ref, bh_ref,
                    out_ref):
    """Whole SC09Encoder forward on VMEM-resident operands."""

    def bn_relu(y):
        # Training-mode BatchNorm (per-column over rows) + ReLU in one pass:
        # var = E[y^2] - E[y]^2 (values are O(1), eps dominates cancellation).
        # Zero-padded lane columns stay exactly zero through this transform.
        inv_m = 1.0 / float(y.shape[0])
        s1 = jnp.sum(y, axis=0, keepdims=True)
        s2 = jnp.sum(y * y, axis=0, keepdims=True)
        mean = s1 * inv_m
        var = s2 * inv_m - mean * mean
        scale = jax.lax.rsqrt(var + EPS)            # EUP slot
        return jnp.maximum((y - mean) * scale, 0.0)

    def tap_layer(h, s_ref, w_ref, b_ref):
        # y = bias + sum_k (S_k @ h) @ W_k
        # S_k are constant 0/1 row-selection matrices (exact gathers of the
        # bf16 activations), so this implements the strided time conv (or the
        # channel-major flatten of linear_4) without materialized im2col
        # patches, transposes or reshapes inside the kernel.
        n_taps = s_ref.shape[0]
        m_out = s_ref.shape[1]
        hb = h.astype(jnp.bfloat16)
        acc = jnp.zeros((m_out, LANE), jnp.float32)
        for k in range(n_taps):                      # static, small (<= 4)
            p = jnp.dot(s_ref[k], hb, preferred_element_type=jnp.float32)
            acc = acc + jnp.dot(p.astype(jnp.bfloat16), w_ref[k],
                                preferred_element_type=jnp.float32)
        return acc + b_ref[...]

    # conv_1 (kernel (1, f)): per-timestep matmul over the frequency axis.
    xb = x_ref[...].astype(jnp.bfloat16)
    y1 = jnp.dot(xb, w1_ref[...], preferred_element_type=jnp.float32) + b1_ref[...]
    h1 = bn_relu(y1)                                        # (B*t,   128)

    # conv_2 / conv_3: time conv k=4, s=2, p=1 as 4 selection+weight matmuls.
    h2 = bn_relu(tap_layer(h1, s2_ref, w2_ref, b2_ref))     # (B*t/2, 128)
    h3 = bn_relu(tap_layer(h2, s3_ref, w3_ref, b3_ref))     # (B*t/4, 128)

    # linear_4 with torch's channel-major flatten folded into per-time-offset
    # weight slices (W4_tau[c, o] = W4[o, c*t3 + tau]).
    h4 = bn_relu(tap_layer(h3, s4_ref, w4_ref, b4_ref))     # (B,     128)

    # Fused mu/logvar heads: one matmul; columns [0:nz)=mu, [nz:2nz)=logvar.
    out_ref[...] = (jnp.dot(h4.astype(jnp.bfloat16), wh_ref[...],
                            preferred_element_type=jnp.float32) + bh_ref[...])


def _full_spec(shape):
    nd = len(shape)
    return pl.BlockSpec(shape, lambda i, _nd=nd: (0,) * _nd)


# --------------------- one-time parameter / constant prep -------------------

def _conv_taps(batch, t_in, kernel=4, stride=2, pad=1):
    """0/1 row-selection matrices for a strided 1-D conv over the time axis."""
    t_out = (t_in + 2 * pad - kernel) // stride + 1
    s = np.zeros((kernel, batch * t_out, batch * t_in), np.float32)
    for b in range(batch):
        for to in range(t_out):
            for k in range(kernel):
                it = stride * to - pad + k
                if 0 <= it < t_in:
                    s[k, b * t_out + to, b * t_in + it] = 1.0
    return s, t_out


def _flatten_taps(batch, t3):
    """Row b of tap tau selects activation row (batch b, time tau)."""
    s = np.zeros((t3, batch, batch * t3), np.float32)
    for b in range(batch):
        for tau in range(t3):
            s[tau, b, b * t3 + tau] = 1.0
    return s


def prepare_params(params, *, nf, nz, t, f, batch):
    """Pre-transpose / repack / lane-pad all weights ONCE (not per forward)."""
    t2, t3 = t // 2, t // 4
    assert max(f, nf, 2 * nf, 4 * nf, 2 * nz) <= LANE

    def pad_w(a, rows=LANE):
        a = jnp.asarray(a, jnp.float32)
        out = jnp.zeros((rows, LANE), jnp.float32)
        out = out.at[: a.shape[0], : a.shape[1]].set(a)
        return out.astype(jnp.bfloat16)

    def pad_b(b):
        b = jnp.asarray(b, jnp.float32)
        return jnp.zeros((1, LANE), jnp.float32).at[0, : b.shape[0]].set(b)

    s2, t2_ = _conv_taps(batch, t)
    s3, t3_ = _conv_taps(batch, t2)
    assert t2_ == t2 and t3_ == t3
    s4 = _flatten_taps(batch, t3)

    return {
        # conv_1: (f -> nf); K stays f, out dim padded to LANE.
        "w1": pad_w(params["w1"].T, rows=f),
        "b1": pad_b(params["b1"]),
        # conv_2 / conv_3: per-tap (C_in, C_out) slices, padded to (128,128).
        "s2": jnp.asarray(s2).astype(jnp.bfloat16),
        "w2": jnp.stack([pad_w(params["w2"][:, :, k].T) for k in range(4)]),
        "b2": pad_b(params["b2"]),
        "s3": jnp.asarray(s3).astype(jnp.bfloat16),
        "w3": jnp.stack([pad_w(params["w3"][:, :, k].T) for k in range(4)]),
        "b3": pad_b(params["b3"]),
        # linear_4 with channel-major flatten folded into per-tau slices.
        "s4": jnp.asarray(s4).astype(jnp.bfloat16),
        "w4": jnp.stack([pad_w(params["w4"][:, tau::t3].T) for tau in range(t3)]),
        "b4": pad_b(params["b4"]),
        # fused mu/logvar heads.
        "wh": pad_w(jnp.concatenate([params["w51"].T, params["w52"].T], axis=1)),
        "bh": pad_b(jnp.concatenate([params["b51"], params["b52"]])),
    }


def init_params(key, nf, nz, t, f):
    """Kaiming-normal fan_in (relu gain), zero biases — matches init_weights."""
    ks = jax.random.split(key, 6)

    def kaiming(k, shape, fan_in):
        return jax.random.normal(k, shape, jnp.float32) * jnp.sqrt(2.0 / fan_in)

    d_in4 = nf * 2 * t // 4
    return {
        "w1": kaiming(ks[0], (nf, f), 1 * 1 * f),          # conv_1 (out, kw=f)
        "b1": jnp.zeros((nf,), jnp.float32),
        "w2": kaiming(ks[1], (nf, nf, 4), nf * 4),         # conv_2 (out, in, kh)
        "b2": jnp.zeros((nf,), jnp.float32),
        "w3": kaiming(ks[2], (2 * nf, nf, 4), nf * 4),     # conv_3 (out, in, kh)
        "b3": jnp.zeros((2 * nf,), jnp.float32),
        "w4": kaiming(ks[3], (4 * nf, d_in4), d_in4),      # linear_4
        "b4": jnp.zeros((4 * nf,), jnp.float32),
        "w51": kaiming(ks[4], (nz, 4 * nf), 4 * nf),
        "b51": jnp.zeros((nz,), jnp.float32),
        "w52": kaiming(ks[5], (nz, 4 * nf), 4 * nf),
        "b52": jnp.zeros((nz,), jnp.float32),
    }


# ------------------------------- forward ------------------------------------

def sc09_encoder_forward(packed, x, *, nz, t, f):
    x2 = jnp.asarray(x, jnp.float32).reshape(-1, f)          # (B*t, f)
    b = packed["s4"].shape[1]
    assert x2.shape[0] == b * t, "batch must match prepare_params(batch=...)"

    args = (x2,
            packed["w1"], packed["b1"],
            packed["s2"], packed["w2"], packed["b2"],
            packed["s3"], packed["w3"], packed["b3"],
            packed["s4"], packed["w4"], packed["b4"],
            packed["wh"], packed["bh"])

    out = pl.pallas_call(
        _encoder_kernel,
        out_shape=jax.ShapeDtypeStruct((b, LANE), jnp.float32),
        grid=(1,),
        in_specs=[_full_spec(a.shape) for a in args],
        out_specs=_full_spec((b, LANE)),
        compiler_params=pltpu.CompilerParams(
            dimension_semantics=("arbitrary",)),
    )(*args)

    return out[:, :nz], out[:, nz:2 * nz]


# ------------------- pure-JAX reference (same numerics) ---------------------

def im2col_time(x_bct, kernel=4, stride=2, pad=1):
    """(B, C, T) -> patches (B*T_out, C*kernel), feature index c*kernel + k."""
    B, C, T = x_bct.shape
    xp = jnp.pad(x_bct, ((0, 0), (0, 0), (pad, pad)))
    T_out = (T + 2 * pad - kernel) // stride + 1
    cols = [xp[:, :, k: k + stride * T_out: stride] for k in range(kernel)]
    patches = jnp.stack(cols, axis=2)                        # (B, C, K, T_out)
    patches = jnp.transpose(patches, (0, 3, 1, 2)).reshape(B * T_out, C * kernel)
    return patches, T_out


def _dot16(a, b):
    return jnp.dot(a.astype(jnp.bfloat16), b.astype(jnp.bfloat16),
                   preferred_element_type=jnp.float32)


def _bn_relu_ref(y):
    mean = jnp.mean(y, axis=0, keepdims=True)
    var = jnp.mean(jnp.square(y - mean), axis=0, keepdims=True)
    return jnp.maximum((y - mean) * jax.lax.rsqrt(var + EPS), 0.0)


def reference_forward(params, x, nf, t, f):
    x = jnp.asarray(x, jnp.float32).reshape(-1, f)
    B = x.shape[0] // t
    h1 = _bn_relu_ref(_dot16(x, params["w1"].T) + params["b1"])
    h1_bct = jnp.transpose(h1.reshape(B, t, nf), (0, 2, 1))
    p2, t2 = im2col_time(h1_bct)
    h2 = _bn_relu_ref(_dot16(p2, params["w2"].reshape(nf, nf * 4).T) + params["b2"])
    h2_bct = jnp.transpose(h2.reshape(B, t2, nf), (0, 2, 1))
    p3, t3 = im2col_time(h2_bct)
    h3 = _bn_relu_ref(_dot16(p3, params["w3"].reshape(2 * nf, nf * 4).T) + params["b3"])
    h3_flat = jnp.transpose(h3.reshape(B, t3, 2 * nf), (0, 2, 1)).reshape(B, 2 * nf * t3)
    h4 = _bn_relu_ref(_dot16(h3_flat, params["w4"].T) + params["b4"])
    mu = _dot16(h4, params["w51"].T) + params["b51"]
    logvar = _dot16(h4, params["w52"].T) + params["b52"]
    return mu, logvar


# TODO(synk): BatchNorm running_mean/var buffer updates (training-side state)
# are not materialized; forward uses batch statistics (PyTorch train mode).

if __name__ == "__main__":
    nf, nz, t, f = 4, 8, 16, 16
    B = 2

    key = jax.random.PRNGKey(0)
    kp, kx = jax.random.split(key)
    params = init_params(kp, nf, nz, t, f)
    packed = prepare_params(params, nf=nf, nz=nz, t=t, f=f, batch=B)

    x = jax.random.normal(kx, (B, 1, t, f), jnp.float32)   # NCHW like the module

    mu, logvar = sc09_encoder_forward(packed, x, nz=nz, t=t, f=f)
    jax.block_until_ready((mu, logvar))

    mu_ref, lv_ref = reference_forward(params, x, nf, t, f)
    assert mu.shape == (B, nz) and logvar.shape == (B, nz)
    assert jnp.allclose(mu, mu_ref, atol=5e-3, rtol=5e-3), \
        float(jnp.max(jnp.abs(mu - mu_ref)))
    assert jnp.allclose(logvar, lv_ref, atol=5e-3, rtol=5e-3), \
        float(jnp.max(jnp.abs(logvar - lv_ref)))

    print("KERNEL_OK")
</pallas_src>

<mosaic_0001>
module attributes {stable_mosaic.version = 11 : i64} {
  func.func @_encoder_kernel(%arg0: i32, %arg1: memref<32x16xf32, #tpu.memory_space<vmem>>, %arg2: memref<16x128xbf16, #tpu.memory_space<vmem>>, %arg3: memref<1x128xf32, #tpu.memory_space<vmem>>, %arg4: memref<4x16x32xbf16, #tpu.memory_space<vmem>>, %arg5: memref<4x128x128xbf16, #tpu.memory_space<vmem>>, %arg6: memref<1x128xf32, #tpu.memory_space<vmem>>, %arg7: memref<4x8x16xbf16, #tpu.memory_space<vmem>>, %arg8: memref<4x128x128xbf16, #tpu.memory_space<vmem>>, %arg9: memref<1x128xf32, #tpu.memory_space<vmem>>, %arg10: memref<4x2x8xbf16, #tpu.memory_space<vmem>>, %arg11: memref<4x128x128xbf16, #tpu.memory_space<vmem>>, %arg12: memref<1x128xf32, #tpu.memory_space<vmem>>, %arg13: memref<128x128xbf16, #tpu.memory_space<vmem>>, %arg14: memref<1x128xf32, #tpu.memory_space<vmem>>, %arg15: memref<2x128xf32, #tpu.memory_space<vmem>>) attributes {dimension_semantics = [#tpu.dimension_semantics<arbitrary>], iteration_bounds = array<i64: 1>, scalar_prefetch = 0 : i64, scratch_operands = 0 : i64, tpu.core_type = #tpu.core_type<tc>, window_params = [{pipeline_mode = #tpu.pipeline_mode<synchronous>, transform_indices = @transform_0, window_bounds = array<i64: 32, 16>}, {pipeline_mode = #tpu.pipeline_mode<synchronous>, transform_indices = @transform_1, window_bounds = array<i64: 16, 128>}, {pipeline_mode = #tpu.pipeline_mode<synchronous>, transform_indices = @transform_2, window_bounds = array<i64: 1, 128>}, {pipeline_mode = #tpu.pipeline_mode<synchronous>, transform_indices = @transform_3, window_bounds = array<i64: 4, 16, 32>}, {pipeline_mode = #tpu.pipeline_mode<synchronous>, transform_indices = @transform_4, window_bounds = array<i64: 4, 128, 128>}, {pipeline_mode = #tpu.pipeline_mode<synchronous>, transform_indices = @transform_5, window_bounds = array<i64: 1, 128>}, {pipeline_mode = #tpu.pipeline_mode<synchronous>, transform_indices = @transform_6, window_bounds = array<i64: 4, 8, 16>}, {pipeline_mode = #tpu.pipeline_mode<synchronous>, transform_indices = @transform_7, window_bounds = array<i64: 4, 128, 128>}, {pipeline_mode = #tpu.pipeline_mode<synchronous>, transform_indices = @transform_8, window_bounds = array<i64: 1, 128>}, {pipeline_mode = #tpu.pipeline_mode<synchronous>, transform_indices = @transform_9, window_bounds = array<i64: 4, 2, 8>}, {pipeline_mode = #tpu.pipeline_mode<synchronous>, transform_indices = @transform_10, window_bounds = array<i64: 4, 128, 128>}, {pipeline_mode = #tpu.pipeline_mode<synchronous>, transform_indices = @transform_11, window_bounds = array<i64: 1, 128>}, {pipeline_mode = #tpu.pipeline_mode<synchronous>, transform_indices = @transform_12, window_bounds = array<i64: 128, 128>}, {pipeline_mode = #tpu.pipeline_mode<synchronous>, transform_indices = @transform_13, window_bounds = array<i64: 1, 128>}, {pipeline_mode = #tpu.pipeline_mode<synchronous>, transform_indices = @transform_14, window_bounds = array<i64: 2, 128>}]} {
    %c0 = arith.constant 0 : index
    %c0_0 = arith.constant 0 : index
    %0 = vector.load %arg1[%c0, %c0_0] : memref<32x16xf32, #tpu.memory_space<vmem>>, vector<32x16xf32>
    %1 = arith.truncf %0 : vector<32x16xf32> to vector<32x16xbf16>
    %c0_1 = arith.constant 0 : index
    %c0_2 = arith.constant 0 : index
    %2 = vector.load %arg2[%c0_1, %c0_2] : memref<16x128xbf16, #tpu.memory_space<vmem>>, vector<16x128xbf16>
    %cst = arith.constant dense<0.000000e+00> : vector<32x128xf32>
    %3 = tpu.matmul %1, %2, %cst {dimension_numbers = #tpu.dot_dimension_numbers<[1], [0], [0], [1], [0, 0, 1, 1], [], []>} : vector<32x16xbf16>, vector<16x128xbf16>, vector<32x128xf32> -> vector<32x128xf32>
    %c0_3 = arith.constant 0 : index
    %c0_4 = arith.constant 0 : index
    %4 = vector.load %arg3[%c0_3, %c0_4] : memref<1x128xf32, #tpu.memory_space<vmem>>, vector<1x128xf32>
    %5 = vector.broadcast %4 : vector<1x128xf32> to vector<32x128xf32>
    %6 = arith.addf %3, %5 : vector<32x128xf32>
    %cst_5 = arith.constant dense<0.000000e+00> : vector<128xf32>
    %7 = vector.multi_reduction <add>, %6, %cst_5 [0] : vector<32x128xf32> to vector<128xf32>
    %8 = vector.shape_cast %7 : vector<128xf32> to vector<1x128xf32>
    %9 = arith.mulf %6, %6 : vector<32x128xf32>
    %cst_6 = arith.constant dense<0.000000e+00> : vector<128xf32>
    %10 = vector.multi_reduction <add>, %9, %cst_6 [0] : vector<32x128xf32> to vector<128xf32>
    %11 = vector.shape_cast %10 : vector<128xf32> to vector<1x128xf32>
    %cst_7 = arith.constant 3.125000e-02 : f32
    %12 = vector.broadcast %cst_7 : f32 to vector<1x128xf32>
    %13 = arith.mulf %8, %12 : vector<1x128xf32>
    %cst_8 = arith.constant 3.125000e-02 : f32
    %14 = vector.broadcast %cst_8 : f32 to vector<1x128xf32>
    %15 = arith.mulf %11, %14 : vector<1x128xf32>
    %16 = arith.mulf %13, %13 : vector<1x128xf32>
    %17 = arith.subf %15, %16 : vector<1x128xf32>
    %cst_9 = arith.constant 9.99999974E-6 : f32
    %18 = vector.broadcast %cst_9 : f32 to vector<1x128xf32>
    %19 = arith.addf %17, %18 : vector<1x128xf32>
    %20 = math.rsqrt %19 : vector<1x128xf32>
    %21 = vector.broadcast %13 : vector<1x128xf32> to vector<32x128xf32>
    %22 = arith.subf %6, %21 : vector<32x128xf32>
    %23 = vector.broadcast %20 : vector<1x128xf32> to vector<32x128xf32>
    %24 = arith.mulf %22, %23 : vector<32x128xf32>
    %cst_10 = arith.constant 0.000000e+00 : f32
    %25 = vector.broadcast %cst_10 : f32 to vector<32x128xf32>
    %26 = arith.maximumf %24, %25 : vector<32x128xf32>
    %27 = arith.truncf %26 : vector<32x128xf32> to vector<32x128xbf16>
    %cst_11 = arith.constant 0.000000e+00 : f32
    %28 = vector.broadcast %cst_11 : f32 to vector<16x128xf32>
    %c0_12 = arith.constant 0 : index
    %c0_13 = arith.constant 0 : index
    %c0_14 = arith.constant 0 : index
    %29 = vector.load %arg4[%c0_12, %c0_13, %c0_14] : memref<4x16x32xbf16, #tpu.memory_space<vmem>>, vector<1x16x32xbf16>
    %30 = vector.shape_cast %29 : vector<1x16x32xbf16> to vector<16x32xbf16>
    %cst_15 = arith.constant dense<0.000000e+00> : vector<16x128xf32>
    %31 = tpu.matmul %30, %27, %cst_15 {dimension_numbers = #tpu.dot_dimension_numbers<[1], [0], [0], [1], [0, 0, 1, 1], [], []>} : vector<16x32xbf16>, vector<32x128xbf16>, vector<16x128xf32> -> vector<16x128xf32>
    %32 = arith.truncf %31 : vector<16x128xf32> to vector<16x128xbf16>
    %c0_16 = arith.constant 0 : index
    %c0_17 = arith.constant 0 : index
    %c0_18 = arith.constant 0 : index
    %33 = vector.load %arg5[%c0_16, %c0_17, %c0_18] : memref<4x128x128xbf16, #tpu.memory_space<vmem>>, vector<1x128x128xbf16>
    %34 = vector.shape_cast %33 : vector<1x128x128xbf16> to vector<128x128xbf16>
    %cst_19 = arith.constant dense<0.000000e+00> : vector<16x128xf32>
    %35 = tpu.matmul %32, %34, %cst_19 {dimension_numbers = #tpu.dot_dimension_numbers<[1], [0], [0], [1], [0, 0, 1, 1], [], []>} : vector<16x128xbf16>, vector<128x128xbf16>, vector<16x128xf32> -> vector<16x128xf32>
    %36 = arith.addf %28, %35 : vector<16x128xf32>
    %c1 = arith.constant 1 : index
    %c0_20 = arith.constant 0 : index
    %c0_21 = arith.constant 0 : index
    %37 = vector.load %arg4[%c1, %c0_20, %c0_21] : memref<4x16x32xbf16, #tpu.memory_space<vmem>>, vector<1x16x32xbf16>
    %38 = vector.shape_cast %37 : vector<1x16x32xbf16> to vector<16x32xbf16>
    %cst_22 = arith.constant dense<0.000000e+00> : vector<16x128xf32>
    %39 = tpu.matmul %38, %27, %cst_22 {dimension_numbers = #tpu.dot_dimension_numbers<[1], [0], [0], [1], [0, 0, 1, 1], [], []>} : vector<16x32xbf16>, vector<32x128xbf16>, vector<16x128xf32> -> vector<16x128xf32>
    %40 = arith.truncf %39 : vector<16x128xf32> to vector<16x128xbf16>
    %c1_23 = arith.constant 1 : index
    %c0_24 = arith.constant 0 : index
    %c0_25 = arith.constant 0 : index
    %41 = vector.load %arg5[%c1_23, %c0_24, %c0_25] : memref<4x128x128xbf16, #tpu.memory_space<vmem>>, vector<1x128x128xbf16>
    %42 = vector.shape_cast %41 : vector<1x128x128xbf16> to vector<128x128xbf16>
    %cst_26 = arith.constant dense<0.000000e+00> : vector<16x128xf32>
    %43 = tpu.matmul %40, %42, %cst_26 {dimension_numbers = #tpu.dot_dimension_numbers<[1], [0], [0], [1], [0, 0, 1, 1], [], []>} : vector<16x128xbf16>, vector<128x128xbf16>, vector<16x128xf32> -> vector<16x128xf32>
    %44 = arith.addf %36, %43 : vector<16x128xf32>
    %c2 = arith.constant 2 : index
    %c0_27 = arith.constant 0 : index
    %c0_28 = arith.constant 0 : index
    %45 = vector.load %arg4[%c2, %c0_27, %c0_28] : memref<4x16x32xbf16, #tpu.memory_space<vmem>>, vector<1x16x32xbf16>
    %46 = vector.shape_cast %45 : vector<1x16x32xbf16> to vector<16x32xbf16>
    %cst_29 = arith.constant dense<0.000000e+00> : vector<16x128xf32>
    %47 = tpu.matmul %46, %27, %cst_29 {dimension_numbers = #tpu.dot_dimension_numbers<[1], [0], [0], [1], [0, 0, 1, 1], [], []>} : vector<16x32xbf16>, vector<32x128xbf16>, vector<16x128xf32> -> vector<16x128xf32>
    %48 = arith.truncf %47 : vector<16x128xf32> to vector<16x128xbf16>
    %c2_30 = arith.constant 2 : index
    %c0_31 = arith.constant 0 : index
    %c0_32 = arith.constant 0 : index
    %49 = vector.load %arg5[%c2_30, %c0_31, %c0_32] : memref<4x128x128xbf16, #tpu.memory_space<vmem>>, vector<1x128x128xbf16>
    %50 = vector.shape_cast %49 : vector<1x128x128xbf16> to vector<128x128xbf16>
    %cst_33 = arith.constant dense<0.000000e+00> : vector<16x128xf32>
    %51 = tpu.matmul %48, %50, %cst_33 {dimension_numbers = #tpu.dot_dimension_numbers<[1], [0], [0], [1], [0, 0, 1, 1], [], []>} : vector<16x128xbf16>, vector<128x128xbf16>, vector<16x128xf32> -> vector<16x128xf32>
    %52 = arith.addf %44, %51 : vector<16x128xf32>
    %c3 = arith.constant 3 : index
    %c0_34 = arith.constant 0 : index
    %c0_35 = arith.constant 0 : index
    %53 = vector.load %arg4[%c3, %c0_34, %c0_35] : memref<4x16x32xbf16, #tpu.memory_space<vmem>>, vector<1x16x32xbf16>
    %54 = vector.shape_cast %53 : vector<1x16x32xbf16> to vector<16x32xbf16>
    %cst_36 = arith.constant dense<0.000000e+00> : vector<16x128xf32>
    %55 = tpu.matmul %54, %27, %cst_36 {dimension_numbers = #tpu.dot_dimension_numbers<[1], [0], [0], [1], [0, 0, 1, 1], [], []>} : vector<16x32xbf16>, vector<32x128xbf16>, vector<16x128xf32> -> vector<16x128xf32>
    %56 = arith.truncf %55 : vector<16x128xf32> to vector<16x128xbf16>
    %c3_37 = arith.constant 3 : index
    %c0_38 = arith.constant 0 : index
    %c0_39 = arith.constant 0 : index
    %57 = vector.load %arg5[%c3_37, %c0_38, %c0_39] : memref<4x128x128xbf16, #tpu.memory_space<vmem>>, vector<1x128x128xbf16>
    %58 = vector.shape_cast %57 : vector<1x128x128xbf16> to vector<128x128xbf16>
    %cst_40 = arith.constant dense<0.000000e+00> : vector<16x128xf32>
    %59 = tpu.matmul %56, %58, %cst_40 {dimension_numbers = #tpu.dot_dimension_numbers<[1], [0], [0], [1], [0, 0, 1, 1], [], []>} : vector<16x128xbf16>, vector<128x128xbf16>, vector<16x128xf32> -> vector<16x128xf32>
    %60 = arith.addf %52, %59 : vector<16x128xf32>
    %c0_41 = arith.constant 0 : index
    %c0_42 = arith.constant 0 : index
    %61 = vector.load %arg6[%c0_41, %c0_42] : memref<1x128xf32, #tpu.memory_space<vmem>>, vector<1x128xf32>
    %62 = vector.broadcast %61 : vector<1x128xf32> to vector<16x128xf32>
    %63 = arith.addf %60, %62 : vector<16x128xf32>
    %cst_43 = arith.constant dense<0.000000e+00> : vector<128xf32>
    %64 = vector.multi_reduction <add>, %63, %cst_43 [0] : vector<16x128xf32> to vector<128xf32>
    %65 = vector.shape_cast %64 : vector<128xf32> to vector<1x128xf32>
    %66 = arith.mulf %63, %63 : vector<16x128xf32>
    %cst_44 = arith.constant dense<0.000000e+00> : vector<128xf32>
    %67 = vector.multi_reduction <add>, %66, %cst_44 [0] : vector<16x128xf32> to vector<128xf32>
    %68 = vector.shape_cast %67 : vector<128xf32> to vector<1x128xf32>
    %cst_45 = arith.constant 6.250000e-02 : f32
    %69 = vector.broadcast %cst_45 : f32 to vector<1x128xf32>
    %70 = arith.mulf %65, %69 : vector<1x128xf32>
    %cst_46 = arith.constant 6.250000e-02 : f32
    %71 = vector.broadcast %cst_46 : f32 to vector<1x128xf32>
    %72 = arith.mulf %68, %71 : vector<1x128xf32>
    %73 = arith.mulf %70, %70 : vector<1x128xf32>
    %74 = arith.subf %72, %73 : vector<1x128xf32>
    %cst_47 = arith.constant 9.99999974E-6 : f32
    %75 = vector.broadcast %cst_47 : f32 to vector<1x128xf32>
    %76 = arith.addf %74, %75 : vector<1x128xf32>
    %77 = math.rsqrt %76 : vector<1x128xf32>
    %78 = vector.broadcast %70 : vector<1x128xf32> to vector<16x128xf32>
    %79 = arith.subf %63, %78 : vector<16x128xf32>
    %80 = vector.broadcast %77 : vector<1x128xf32> to vector<16x128xf32>
    %81 = arith.mulf %79, %80 : vector<16x128xf32>
    %cst_48 = arith.constant 0.000000e+00 : f32
    %82 = vector.broadcast %cst_48 : f32 to vector<16x128xf32>
    %83 = arith.maximumf %81, %82 : vector<16x128xf32>
    %84 = arith.truncf %83 : vector<16x128xf32> to vector<16x128xbf16>
    %cst_49 = arith.constant 0.000000e+00 : f32
    %85 = vector.broadcast %cst_49 : f32 to vector<8x128xf32>
    %c0_50 = arith.constant 0 : index
    %c0_51 = arith.constant 0 : index
    %c0_52 = arith.constant 0 : index
    %86 = vector.load %arg7[%c0_50, %c0_51, %c0_52] : memref<4x8x16xbf16, #tpu.memory_space<vmem>>, vector<1x8x16xbf16>
    %87 = vector.shape_cast %86 : vector<1x8x16xbf16> to vector<8x16xbf16>
    %cst_53 = arith.constant dense<0.000000e+00> : vector<8x128xf32>
    %88 = tpu.matmul %87, %84, %cst_53 {dimension_numbers = #tpu.dot_dimension_numbers<[1], [0], [0], [1], [0, 0, 1, 1], [], []>} : vector<8x16xbf16>, vector<16x128xbf16>, vector<8x128xf32> -> vector<8x128xf32>
    %89 = arith.truncf %88 : vector<8x128xf32> to vector<8x128xbf16>
    %c0_54 = arith.constant 0 : index
    %c0_55 = arith.constant 0 : index
    %c0_56 = arith.constant 0 : index
    %90 = vector.load %arg8[%c0_54, %c0_55, %c0_56] : memref<4x128x128xbf16, #tpu.memory_space<vmem>>, vector<1x128x128xbf16>
    %91 = vector.shape_cast %90 : vector<1x128x128xbf16> to vector<128x128xbf16>
    %cst_57 = arith.constant dense<0.000000e+00> : vector<8x128xf32>
    %92 = tpu.matmul %89, %91, %cst_57 {dimension_numbers = #tpu.dot_dimension_numbers<[1], [0], [0], [1], [0, 0, 1, 1], [], []>} : vector<8x128xbf16>, vector<128x128xbf16>, vector<8x128xf32> -> vector<8x128xf32>
    %93 = arith.addf %85, %92 : vector<8x128xf32>
    %c1_58 = arith.constant 1 : index
    %c0_59 = arith.constant 0 : index
    %c0_60 = arith.constant 0 : index
    %94 = vector.load %arg7[%c1_58, %c0_59, %c0_60] : memref<4x8x16xbf16, #tpu.memory_space<vmem>>, vector<1x8x16xbf16>
    %95 = vector.shape_cast %94 : vector<1x8x16xbf16> to vector<8x16xbf16>
    %cst_61 = arith.constant dense<0.000000e+00> : vector<8x128xf32>
    %96 = tpu.matmul %95, %84, %cst_61 {dimension_numbers = #tpu.dot_dimension_numbers<[1], [0], [0], [1], [0, 0, 1, 1], [], []>} : vector<8x16xbf16>, vector<16x128xbf16>, vector<8x128xf32> -> vector<8x128xf32>
    %97 = arith.truncf %96 : vector<8x128xf32> to vector<8x128xbf16>
    %c1_62 = arith.constant 1 : index
    %c0_63 = arith.constant 0 : index
    %c0_64 = arith.constant 0 : index
    %98 = vector.load %arg8[%c1_62, %c0_63, %c0_64] : memref<4x128x128xbf16, #tpu.memory_space<vmem>>, vector<1x128x128xbf16>
    %99 = vector.shape_cast %98 : vector<1x128x128xbf16> to vector<128x128xbf16>
    %cst_65 = arith.constant dense<0.000000e+00> : vector<8x128xf32>
    %100 = tpu.matmul %97, %99, %cst_65 {dimension_numbers = #tpu.dot_dimension_numbers<[1], [0], [0], [1], [0, 0, 1, 1], [], []>} : vector<8x128xbf16>, vector<128x128xbf16>, vector<8x128xf32> -> vector<8x128xf32>
    %101 = arith.addf %93, %100 : vector<8x128xf32>
    %c2_66 = arith.constant 2 : index
    %c0_67 = arith.constant 0 : index
    %c0_68 = arith.constant 0 : index
    %102 = vector.load %arg7[%c2_66, %c0_67, %c0_68] : memref<4x8x16xbf16, #tpu.memory_space<vmem>>, vector<1x8x16xbf16>
    %103 = vector.shape_cast %102 : vector<1x8x16xbf16> to vector<8x16xbf16>
    %cst_69 = arith.constant dense<0.000000e+00> : vector<8x128xf32>
    %104 = tpu.matmul %103, %84, %cst_69 {dimension_numbers = #tpu.dot_dimension_numbers<[1], [0], [0], [1], [0, 0, 1, 1], [], []>} : vector<8x16xbf16>, vector<16x128xbf16>, vector<8x128xf32> -> vector<8x128xf32>
    %105 = arith.truncf %104 : vector<8x128xf32> to vector<8x128xbf16>
    %c2_70 = arith.constant 2 : index
    %c0_71 = arith.constant 0 : index
    %c0_72 = arith.constant 0 : index
    %106 = vector.load %arg8[%c2_70, %c0_71, %c0_72] : memref<4x128x128xbf16, #tpu.memory_space<vmem>>, vector<1x128x128xbf16>
    %107 = vector.shape_cast %106 : vector<1x128x128xbf16> to vector<128x128xbf16>
    %cst_73 = arith.constant dense<0.000000e+00> : vector<8x128xf32>
    %108 = tpu.matmul %105, %107, %cst_73 {dimension_numbers = #tpu.dot_dimension_numbers<[1], [0], [0], [1], [0, 0, 1, 1], [], []>} : vector<8x128xbf16>, vector<128x128xbf16>, vector<8x128xf32> -> vector<8x128xf32>
    %109 = arith.addf %101, %108 : vector<8x128xf32>
    %c3_74 = arith.constant 3 : index
    %c0_75 = arith.constant 0 : index
    %c0_76 = arith.constant 0 : index
    %110 = vector.load %arg7[%c3_74, %c0_75, %c0_76] : memref<4x8x16xbf16, #tpu.memory_space<vmem>>, vector<1x8x16xbf16>
    %111 = vector.shape_cast %110 : vector<1x8x16xbf16> to vector<8x16xbf16>
    %cst_77 = arith.constant dense<0.000000e+00> : vector<8x128xf32>
    %112 = tpu.matmul %111, %84, %cst_77 {dimension_numbers = #tpu.dot_dimension_numbers<[1], [0], [0], [1], [0, 0, 1, 1], [], []>} : vector<8x16xbf16>, vector<16x128xbf16>, vector<8x128xf32> -> vector<8x128xf32>
    %113 = arith.truncf %112 : vector<8x128xf32> to vector<8x128xbf16>
    %c3_78 = arith.constant 3 : index
    %c0_79 = arith.constant 0 : index
    %c0_80 = arith.constant 0 : index
    %114 = vector.load %arg8[%c3_78, %c0_79, %c0_80] : memref<4x128x128xbf16, #tpu.memory_space<vmem>>, vector<1x128x128xbf16>
    %115 = vector.shape_cast %114 : vector<1x128x128xbf16> to vector<128x128xbf16>
    %cst_81 = arith.constant dense<0.000000e+00> : vector<8x128xf32>
    %116 = tpu.matmul %113, %115, %cst_81 {dimension_numbers = #tpu.dot_dimension_numbers<[1], [0], [0], [1], [0, 0, 1, 1], [], []>} : vector<8x128xbf16>, vector<128x128xbf16>, vector<8x128xf32> -> vector<8x128xf32>
    %117 = arith.addf %109, %116 : vector<8x128xf32>
    %c0_82 = arith.constant 0 : index
    %c0_83 = arith.constant 0 : index
    %118 = vector.load %arg9[%c0_82, %c0_83] : memref<1x128xf32, #tpu.memory_space<vmem>>, vector<1x128xf32>
    %119 = vector.broadcast %118 : vector<1x128xf32> to vector<8x128xf32>
    %120 = arith.addf %117, %119 : vector<8x128xf32>
    %cst_84 = arith.constant dense<0.000000e+00> : vector<128xf32>
    %121 = vector.multi_reduction <add>, %120, %cst_84 [0] : vector<8x128xf32> to vector<128xf32>
    %122 = vector.shape_cast %121 : vector<128xf32> to vector<1x128xf32>
    %123 = arith.mulf %120, %120 : vector<8x128xf32>
    %cst_85 = arith.constant dense<0.000000e+00> : vector<128xf32>
    %124 = vector.multi_reduction <add>, %123, %cst_85 [0] : vector<8x128xf32> to vector<128xf32>
    %125 = vector.shape_cast %124 : vector<128xf32> to vector<1x128xf32>
    %cst_86 = arith.constant 1.250000e-01 : f32
    %126 = vector.broadcast %cst_86 : f32 to vector<1x128xf32>
    %127 = arith.mulf %122, %126 : vector<1x128xf32>
    %cst_87 = arith.constant 1.250000e-01 : f32
    %128 = vector.broadcast %cst_87 : f32 to vector<1x128xf32>
    %129 = arith.mulf %125, %128 : vector<1x128xf32>
    %130 = arith.mulf %127, %127 : vector<1x128xf32>
    %131 = arith.subf %129, %130 : vector<1x128xf32>
    %cst_88 = arith.constant 9.99999974E-6 : f32
    %132 = vector.broadcast %cst_88 : f32 to vector<1x128xf32>
    %133 = arith.addf %131, %132 : vector<1x128xf32>
    %134 = math.rsqrt %133 : vector<1x128xf32>
    %135 = vector.broadcast %127 : vector<1x128xf32> to vector<8x128xf32>
    %136 = arith.subf %120, %135 : vector<8x128xf32>
    %137 = vector.broadcast %134 : vector<1x128xf32> to vector<8x128xf32>
    %138 = arith.mulf %136, %137 : vector<8x128xf32>
    %cst_89 = arith.constant 0.000000e+00 : f32
    %139 = vector.broadcast %cst_89 : f32 to vector<8x128xf32>
    %140 = arith.maximumf %138, %139 : vector<8x128xf32>
    %141 = arith.truncf %140 : vector<8x128xf32> to vector<8x128xbf16>
    %cst_90 = arith.constant 0.000000e+00 : f32
    %142 = vector.broadcast %cst_90 : f32 to vector<2x128xf32>
    %c0_91 = arith.constant 0 : index
    %c0_92 = arith.constant 0 : index
    %c0_93 = arith.constant 0 : index
    %143 = vector.load %arg10[%c0_91, %c0_92, %c0_93] : memref<4x2x8xbf16, #tpu.memory_space<vmem>>, vector<1x2x8xbf16>
    %144 = vector.shape_cast %143 : vector<1x2x8xbf16> to vector<2x8xbf16>
    %cst_94 = arith.constant dense<0.000000e+00> : vector<2x128xf32>
    %145 = tpu.matmul %144, %141, %cst_94 {dimension_numbers = #tpu.dot_dimension_numbers<[1], [0], [0], [1], [0, 0, 1, 1], [], []>} : vector<2x8xbf16>, vector<8x128xbf16>, vector<2x128xf32> -> vector<2x128xf32>
    %146 = arith.truncf %145 : vector<2x128xf32> to vector<2x128xbf16>
    %c0_95 = arith.constant 0 : index
    %c0_96 = arith.constant 0 : index
    %c0_97 = arith.constant 0 : index
    %147 = vector.load %arg11[%c0_95, %c0_96, %c0_97] : memref<4x128x128xbf16, #tpu.memory_space<vmem>>, vector<1x128x128xbf16>
    %148 = vector.shape_cast %147 : vector<1x128x128xbf16> to vector<128x128xbf16>
    %cst_98 = arith.constant dense<0.000000e+00> : vector<2x128xf32>
    %149 = tpu.matmul %146, %148, %cst_98 {dimension_numbers = #tpu.dot_dimension_numbers<[1], [0], [0], [1], [0, 0, 1, 1], [], []>} : vector<2x128xbf16>, vector<128x128xbf16>, vector<2x128xf32> -> vector<2x128xf32>
    %150 = arith.addf %142, %149 : vector<2x128xf32>
    %c1_99 = arith.constant 1 : index
    %c0_100 = arith.constant 0 : index
    %c0_101 = arith.constant 0 : index
    %151 = vector.load %arg10[%c1_99, %c0_100, %c0_101] : memref<4x2x8xbf16, #tpu.memory_space<vmem>>, vector<1x2x8xbf16>
    %152 = vector.shape_cast %151 : vector<1x2x8xbf16> to vector<2x8xbf16>
    %cst_102 = arith.constant dense<0.000000e+00> : vector<2x128xf32>
    %153 = tpu.matmul %152, %141, %cst_102 {dimension_numbers = #tpu.dot_dimension_numbers<[1], [0], [0], [1], [0, 0, 1, 1], [], []>} : vector<2x8xbf16>, vector<8x128xbf16>, vector<2x128xf32> -> vector<2x128xf32>
    %154 = arith.truncf %153 : vector<2x128xf32> to vector<2x128xbf16>
    %c1_103 = arith.constant 1 : index
    %c0_104 = arith.constant 0 : index
    %c0_105 = arith.constant 0 : index
    %155 = vector.load %arg11[%c1_103, %c0_104, %c0_105] : memref<4x128x128xbf16, #tpu.memory_space<vmem>>, vector<1x128x128xbf16>
    %156 = vector.shape_cast %155 : vector<1x128x128xbf16> to vector<128x128xbf16>
    %cst_106 = arith.constant dense<0.000000e+00> : vector<2x128xf32>
    %157 = tpu.matmul %154, %156, %cst_106 {dimension_numbers = #tpu.dot_dimension_numbers<[1], [0], [0], [1], [0, 0, 1, 1], [], []>} : vector<2x128xbf16>, vector<128x128xbf16>, vector<2x128xf32> -> vector<2x128xf32>
    %158 = arith.addf %150, %157 : vector<2x128xf32>
    %c2_107 = arith.constant 2 : index
    %c0_108 = arith.constant 0 : index
    %c0_109 = arith.constant 0 : index
    %159 = vector.load %arg10[%c2_107, %c0_108, %c0_109] : memref<4x2x8xbf16, #tpu.memory_space<vmem>>, vector<1x2x8xbf16>
    %160 = vector.shape_cast %159 : vector<1x2x8xbf16> to vector<2x8xbf16>
    %cst_110 = arith.constant dense<0.000000e+00> : vector<2x128xf32>
    %161 = tpu.matmul %160, %141, %cst_110 {dimension_numbers = #tpu.dot_dimension_numbers<[1], [0], [0], [1], [0, 0, 1, 1], [], []>} : vector<2x8xbf16>, vector<8x128xbf16>, vector<2x128xf32> -> vector<2x128xf32>
    %162 = arith.truncf %161 : vector<2x128xf32> to vector<2x128xbf16>
    %c2_111 = arith.constant 2 : index
    %c0_112 = arith.constant 0 : index
    %c0_113 = arith.constant 0 : index
    %163 = vector.load %arg11[%c2_111, %c0_112, %c0_113] : memref<4x128x128xbf16, #tpu.memory_space<vmem>>, vector<1x128x128xbf16>
    %164 = vector.shape_cast %163 : vector<1x128x128xbf16> to vector<128x128xbf16>
    %cst_114 = arith.constant dense<0.000000e+00> : vector<2x128xf32>
    %165 = tpu.matmul %162, %164, %cst_114 {dimension_numbers = #tpu.dot_dimension_numbers<[1], [0], [0], [1], [0, 0, 1, 1], [], []>} : vector<2x128xbf16>, vector<128x128xbf16>, vector<2x128xf32> -> vector<2x128xf32>
    %166 = arith.addf %158, %165 : vector<2x128xf32>
    %c3_115 = arith.constant 3 : index
    %c0_116 = arith.constant 0 : index
    %c0_117 = arith.constant 0 : index
    %167 = vector.load %arg10[%c3_115, %c0_116, %c0_117] : memref<4x2x8xbf16, #tpu.memory_space<vmem>>, vector<1x2x8xbf16>
    %168 = vector.shape_cast %167 : vector<1x2x8xbf16> to vector<2x8xbf16>
    %cst_118 = arith.constant dense<0.000000e+00> : vector<2x128xf32>
    %169 = tpu.matmul %168, %141, %cst_118 {dimension_numbers = #tpu.dot_dimension_numbers<[1], [0], [0], [1], [0, 0, 1, 1], [], []>} : vector<2x8xbf16>, vector<8x128xbf16>, vector<2x128xf32> -> vector<2x128xf32>
    %170 = arith.truncf %169 : vector<2x128xf32> to vector<2x128xbf16>
    %c3_119 = arith.constant 3 : index
    %c0_120 = arith.constant 0 : index
    %c0_121 = arith.constant 0 : index
    %171 = vector.load %arg11[%c3_119, %c0_120, %c0_121] : memref<4x128x128xbf16, #tpu.memory_space<vmem>>, vector<1x128x128xbf16>
    %172 = vector.shape_cast %171 : vector<1x128x128xbf16> to vector<128x128xbf16>
    %cst_122 = arith.constant dense<0.000000e+00> : vector<2x128xf32>
    %173 = tpu.matmul %170, %172, %cst_122 {dimension_numbers = #tpu.dot_dimension_numbers<[1], [0], [0], [1], [0, 0, 1, 1], [], []>} : vector<2x128xbf16>, vector<128x128xbf16>, vector<2x128xf32> -> vector<2x128xf32>
    %174 = arith.addf %166, %173 : vector<2x128xf32>
    %c0_123 = arith.constant 0 : index
    %c0_124 = arith.constant 0 : index
    %175 = vector.load %arg12[%c0_123, %c0_124] : memref<1x128xf32, #tpu.memory_space<vmem>>, vector<1x128xf32>
    %176 = vector.broadcast %175 : vector<1x128xf32> to vector<2x128xf32>
    %177 = arith.addf %174, %176 : vector<2x128xf32>
    %cst_125 = arith.constant dense<0.000000e+00> : vector<128xf32>
    %178 = vector.multi_reduction <add>, %177, %cst_125 [0] : vector<2x128xf32> to vector<128xf32>
    %179 = vector.shape_cast %178 : vector<128xf32> to vector<1x128xf32>
    %180 = arith.mulf %177, %177 : vector<2x128xf32>
    %cst_126 = arith.constant dense<0.000000e+00> : vector<128xf32>
    %181 = vector.multi_reduction <add>, %180, %cst_126 [0] : vector<2x128xf32> to vector<128xf32>
    %182 = vector.shape_cast %181 : vector<128xf32> to vector<1x128xf32>
    %cst_127 = arith.constant 5.000000e-01 : f32
    %183 = vector.broadcast %cst_127 : f32 to vector<1x128xf32>
    %184 = arith.mulf %179, %183 : vector<1x128xf32>
    %cst_128 = arith.constant 5.000000e-01 : f32
    %185 = vector.broadcast %cst_128 : f32 to vector<1x128xf32>
    %186 = arith.mulf %182, %185 : vector<1x128xf32>
    %187 = arith.mulf %184, %184 : vector<1x128xf32>
    %188 = arith.subf %186, %187 : vector<1x128xf32>
    %cst_129 = arith.constant 9.99999974E-6 : f32
    %189 = vector.broadcast %cst_129 : f32 to vector<1x128xf32>
    %190 = arith.addf %188, %189 : vector<1x128xf32>
    %191 = math.rsqrt %190 : vector<1x128xf32>
    %192 = vector.broadcast %184 : vector<1x128xf32> to vector<2x128xf32>
    %193 = arith.subf %177, %192 : vector<2x128xf32>
    %194 = vector.broadcast %191 : vector<1x128xf32> to vector<2x128xf32>
    %195 = arith.mulf %193, %194 : vector<2x128xf32>
    %cst_130 = arith.constant 0.000000e+00 : f32
    %196 = vector.broadcast %cst_130 : f32 to vector<2x128xf32>
    %197 = arith.maximumf %195, %196 : vector<2x128xf32>
    %198 = arith.truncf %197 : vector<2x128xf32> to vector<2x128xbf16>
    %c0_131 = arith.constant 0 : index
    %c0_132 = arith.constant 0 : index
    %199 = vector.load %arg13[%c0_131, %c0_132] : memref<128x128xbf16, #tpu.memory_space<vmem>>, vector<128x128xbf16>
    %cst_133 = arith.constant dense<0.000000e+00> : vector<2x128xf32>
    %200 = tpu.matmul %198, %199, %cst_133 {dimension_numbers = #tpu.dot_dimension_numbers<[1], [0], [0], [1], [0, 0, 1, 1], [], []>} : vector<2x128xbf16>, vector<128x128xbf16>, vector<2x128xf32> -> vector<2x128xf32>
    %c0_134 = arith.constant 0 : index
    %c0_135 = arith.constant 0 : index
    %201 = vector.load %arg14[%c0_134, %c0_135] : memref<1x128xf32, #tpu.memory_space<vmem>>, vector<1x128xf32>
    %202 = vector.broadcast %201 : vector<1x128xf32> to vector<2x128xf32>
    %203 = arith.addf %200, %202 : vector<2x128xf32>
    %c0_136 = arith.constant 0 : index
    %c0_137 = arith.constant 0 : index
    %204 = vector.load %arg15[%c0_136, %c0_137] : memref<2x128xf32, #tpu.memory_space<vmem>>, vector<2x128xf32>
    tpu.vector_store %arg15[%c0_136, %c0_137], %203 {strides = array<i32>} : memref<2x128xf32, #tpu.memory_space<vmem>>, vector<2x128xf32>,
    return
  }
  func.func @transform_0(%arg0: i32) -> (i32, i32) {
    %c0_i32 = arith.constant 0 : i32
    %c0_i32_0 = arith.constant 0 : i32
    %c0_i32_1 = arith.constant 0 : i32
    return %c0_i32, %c0_i32_0 : i32, i32
  }
  func.func @transform_1(%arg0: i32) -> (i32, i32) {
    %c0_i32 = arith.constant 0 : i32
    %c0_i32_0 = arith.constant 0 : i32
    %c0_i32_1 = arith.constant 0 : i32
    return %c0_i32, %c0_i32_0 : i32, i32
  }
  func.func @transform_2(%arg0: i32) -> (i32, i32) {
    %c0_i32 = arith.constant 0 : i32
    %c0_i32_0 = arith.constant 0 : i32
    %c0_i32_1 = arith.constant 0 : i32
    return %c0_i32, %c0_i32_0 : i32, i32
  }
  func.func @transform_3(%arg0: i32) -> (i32, i32, i32) {
    %c0_i32 = arith.constant 0 : i32
    %c0_i32_0 = arith.constant 0 : i32
    %c0_i32_1 = arith.constant 0 : i32
    %c0_i32_2 = arith.constant 0 : i32
    return %c0_i32, %c0_i32_0, %c0_i32_1 : i32, i32, i32
  }
  func.func @transform_4(%arg0: i32) -> (i32, i32, i32) {
    %c0_i32 = arith.constant 0 : i32
    %c0_i32_0 = arith.constant 0 : i32
    %c0_i32_1 = arith.constant 0 : i32
    %c0_i32_2 = arith.constant 0 : i32
    return %c0_i32, %c0_i32_0, %c0_i32_1 : i32, i32, i32
  }
  func.func @transform_5(%arg0: i32) -> (i32, i32) {
    %c0_i32 = arith.constant 0 : i32
    %c0_i32_0 = arith.constant 0 : i32
    %c0_i32_1 = arith.constant 0 : i32
    return %c0_i32, %c0_i32_0 : i32, i32
  }
  func.func @transform_6(%arg0: i32) -> (i32, i32, i32) {
    %c0_i32 = arith.constant 0 : i32
    %c0_i32_0 = arith.constant 0 : i32
    %c0_i32_1 = arith.constant 0 : i32
    %c0_i32_2 = arith.constant 0 : i32
    return %c0_i32, %c0_i32_0, %c0_i32_1 : i32, i32, i32
  }
  func.func @transform_7(%arg0: i32) -> (i32, i32, i32) {
    %c0_i32 = arith.constant 0 : i32
    %c0_i32_0 = arith.constant 0 : i32
    %c0_i32_1 = arith.constant 0 : i32
    %c0_i32_2 = arith.constant 0 : i32
    return %c0_i32, %c0_i32_0, %c0_i32_1 : i32, i32, i32
  }
  func.func @transform_8(%arg0: i32) -> (i32, i32) {
    %c0_i32 = arith.constant 0 : i32
    %c0_i32_0 = arith.constant 0 : i32
    %c0_i32_1 = arith.constant 0 : i32
    return %c0_i32, %c0_i32_0 : i32, i32
  }
  func.func @transform_9(%arg0: i32) -> (i32, i32, i32) {
    %c0_i32 = arith.constant 0 : i32
    %c0_i32_0 = arith.constant 0 : i32
    %c0_i32_1 = arith.constant 0 : i32
    %c0_i32_2 = arith.constant 0 : i32
    return %c0_i32, %c0_i32_0, %c0_i32_1 : i32, i32, i32
  }
  func.func @transform_10(%arg0: i32) -> (i32, i32, i32) {
    %c0_i32 = arith.constant 0 : i32
    %c0_i32_0 = arith.constant 0 : i32
    %c0_i32_1 = arith.constant 0 : i32
    %c0_i32_2 = arith.constant 0 : i32
    return %c0_i32, %c0_i32_0, %c0_i32_1 : i32, i32, i32
  }
  func.func @transform_11(%arg0: i32) -> (i32, i32) {
    %c0_i32 = arith.constant 0 : i32
    %c0_i32_0 = arith.constant 0 : i32
    %c0_i32_1 = arith.constant 0 : i32
    return %c0_i32, %c0_i32_0 : i32, i32
  }
  func.func @transform_12(%arg0: i32) -> (i32, i32) {
    %c0_i32 = arith.constant 0 : i32
    %c0_i32_0 = arith.constant 0 : i32
    %c0_i32_1 = arith.constant 0 : i32
    return %c0_i32, %c0_i32_0 : i32, i32
  }
  func.func @transform_13(%arg0: i32) -> (i32, i32) {
    %c0_i32 = arith.constant 0 : i32
    %c0_i32_0 = arith.constant 0 : i32
    %c0_i32_1 = arith.constant 0 : i32
    return %c0_i32, %c0_i32_0 : i32, i32
  }
  func.func @transform_14(%arg0: i32) -> (i32, i32) {
    %c0_i32 = arith.constant 0 : i32
    %c0_i32_0 = arith.constant 0 : i32
    %c0_i32_1 = arith.constant 0 : i32
    return %c0_i32, %c0_i32_0 : i32, i32
  }
}

</mosaic_0001>

<llo_original>
// kernel: tpu_custom_call.1
$region0: #{tpu_custom_call.1}
  #allocation0 [shape = 'u32[]', space=smem, size = 0x4, offset = 0x4, fixed_abs, tag = 'smem constant byte address 0x4 - core index']
  #allocation1 [shape = 'u32[72,128]{1,0:T(1,128)}', space=vmem, size = 0x9000, scoped, tag = 'internal scratch']
  %s0 = inlined_call_operand.vmem [shape: f32[32,16], index: 0, kind: input, shape index: {}]
  %s1 = inlined_call_operand.hbm [shape: bf16[16,128], index: 1, kind: input, shape index: {}]
  %s2 = inlined_call_operand.hbm [shape: f32[1,128], index: 2, kind: input, shape index: {}]
  %s3 = inlined_call_operand.vmem [shape: bf16[4,16,32], index: 3, kind: input, shape index: {}]
  %s4 = inlined_call_operand.hbm [shape: bf16[4,128,128], index: 4, kind: input, shape index: {}]
  %s5 = inlined_call_operand.hbm [shape: f32[1,128], index: 5, kind: input, shape index: {}]
  %s6 = inlined_call_operand.vmem [shape: bf16[4,8,16], index: 6, kind: input, shape index: {}]
  %s7 = inlined_call_operand.hbm [shape: bf16[4,128,128], index: 7, kind: input, shape index: {}]
  %s8 = inlined_call_operand.vmem [shape: f32[1,128], index: 8, kind: input, shape index: {}]
  %s9 = inlined_call_operand.vmem [shape: bf16[4,2,8], index: 9, kind: input, shape index: {}]
  %s10 = inlined_call_operand.hbm [shape: bf16[4,128,128], index: 10, kind: input, shape index: {}]
  %s11 = inlined_call_operand.vmem [shape: f32[1,128], index: 11, kind: input, shape index: {}]
  %s12 = inlined_call_operand.hbm [shape: bf16[128,128], index: 12, kind: input, shape index: {}]
  %s13 = inlined_call_operand.vmem [shape: f32[1,128], index: 13, kind: input, shape index: {}]
  %s14 = inlined_call_operand.hbm [shape: f32[2,128], index: 14, kind: output, shape index: {}]
  %s15 = sld [smem:[#allocation0]]
  $region94: #{tpu_custom_call.1} parent=0
    _
  %s17 = ssub.s32 1, %s15
  %s18 = scalar_select 0, %s17, %s15
  $region1: #{tpu_custom_call.1} parent=0
    #allocation2 [shape = 'u8[4096]{0}', space=vmem, size = 0x1000, scoped, tag = 'input window, operand 1, single buffered']
    #allocation3 [shape = 's32[1]{0}', space=sflag, size = 0x4, scoped, tag = 'scoped memory for tpu_custom_call.1']
    #allocation4 [shape = 's32[1]{0}', space=sflag, size = 0x4, scoped, tag = 'scoped memory for tpu_custom_call.1']
    #allocation5 [shape = 'u8[512]{0}', space=vmem, size = 0x400, scoped, tag = 'input window, operand 2, single buffered']
    #allocation6 [shape = 's32[1]{0}', space=sflag, size = 0x4, scoped, tag = 'scoped memory for tpu_custom_call.1']
    #allocation7 [shape = 'u8[131072]{0}', space=vmem, size = 0x20000, scoped, tag = 'input window, operand 4, single buffered']
    #allocation8 [shape = 'u8[512]{0}', space=vmem, size = 0x400, scoped, tag = 'input window, operand 5, single buffered']
    #allocation9 [shape = 's32[1]{0}', space=sflag, size = 0x4, scoped, tag = 'scoped memory for tpu_custom_call.1']
    #allocation10 [shape = 'u8[131072]{0}', space=vmem, size = 0x20000, scoped, tag = 'input window, operand 7, single buffered']
    #allocation11 [shape = 'u8[131072]{0}', space=vmem, size = 0x20000, scoped, tag = 'input window, operand 10, single buffered']
    #allocation12 [shape = 's32[1]{0}', space=sflag, size = 0x4, scoped, tag = 'scoped memory for tpu_custom_call.1']
    #allocation13 [shape = 'u8[32768]{0}', space=vmem, size = 0x8000, scoped, tag = 'input window, operand 12, single buffered']
    #allocation14 [shape = 'u8[1024]{0}', space=vmem, size = 0x400, scoped, tag = 'output window, operand 0, single buffered']
    %19 = vsyncpa [#allocation3], 0
    %20 = vsyncpa [#allocation6], 0
    %21 = vsyncpa [#allocation9], 0
    %22 = vsyncpa [#allocation12], 0
    %23 = vsyncpa [#allocation4], 0
    // Predicated region
    $region2: #{tpu_custom_call.1} parent=1 // pred_check
      _
    $region3: #{tpu_custom_call.1} parent=1 // pred_check_branch
      %25 = sbr.rel (0) target = $region5
    $region4: #{tpu_custom_call.1} parent=1 // pred_region
      _
    $region5: #{tpu_custom_call.1} parent=1 // pred_fallthru
      _
    // Predicated region
    $region6: #{tpu_custom_call.1} parent=1 // pred_check
      _
    $region7: #{tpu_custom_call.1} parent=1 // pred_check_branch
      %27 = sbr.rel (0) target = $region9
    $region8: #{tpu_custom_call.1} parent=1 // pred_region
      %29 = vsyncadd [#allocation3], 0
      %s30 = sshll.u32 %s1, 4
      %s31 = int_to_ptr.hbm [resolvable:$true] %s30
      %s32 = sshll.u32 [#allocation2], 4
      %s33 = int_to_ptr.vmem [resolvable:$true] %s32
      %38 = dma.hbm_to_vmem [thread:$0]  %s31, 128, %s33, [#allocation3], 64, 64, 4
    $region9: #{tpu_custom_call.1} parent=1 // pred_fallthru
      _
    // Predicated region
    $region10: #{tpu_custom_call.1} parent=1 // pred_check
      _
    $region11: #{tpu_custom_call.1} parent=1 // pred_check_branch
      %40 = sbr.rel (0) target = $region13
    $region12: #{tpu_custom_call.1} parent=1 // pred_region
      %42 = vsyncadd [#allocation6], 0
      %s44 = sshll.u32 %s2, 4
      %s45 = int_to_ptr.hbm [resolvable:$true] %s44
      %s46 = sshll.u32 [#allocation5], 4
      %s47 = int_to_ptr.vmem [resolvable:$true] %s46
      %49 = dma.hbm_to_vmem [thread:$0]  %s45, 16, %s47, [#allocation6]
    $region13: #{tpu_custom_call.1} parent=1 // pred_fallthru
      _
    // Predicated region
    $region14: #{tpu_custom_call.1} parent=1 // pred_check
      _
    $region15: #{tpu_custom_call.1} parent=1 // pred_check_branch
      %51 = sbr.rel (0) target = $region17
    $region16: #{tpu_custom_call.1} parent=1 // pred_region
      _
    $region17: #{tpu_custom_call.1} parent=1 // pred_fallthru
      _
    // Predicated region
    $region18: #{tpu_custom_call.1} parent=1 // pred_check
      _
    $region19: #{tpu_custom_call.1} parent=1 // pred_check_branch
      %53 = sbr.rel (0) target = $region21
    $region20: #{tpu_custom_call.1} parent=1 // pred_region
      %55 = vsyncadd [#allocation6], 0
      %s56 = sshll.u32 %s4, 4
      %s57 = int_to_ptr.hbm [resolvable:$true] %s56
      %s58 = sshll.u32 [#allocation7], 4
      %s59 = int_to_ptr.vmem [resolvable:$true] %s58
      %64 = dma.hbm_to_vmem [thread:$0]  %s57, 4096, %s59, [#allocation6], 64, 64, 4
    $region21: #{tpu_custom_call.1} parent=1 // pred_fallthru
      _
    // Predicated region
    $region22: #{tpu_custom_call.1} parent=1 // pred_check
      _
    $region23: #{tpu_custom_call.1} parent=1 // pred_check_branch
      %66 = sbr.rel (0) target = $region25
    $region24: #{tpu_custom_call.1} parent=1 // pred_region
      %68 = vsyncadd [#allocation9], 0
      %s70 = sshll.u32 %s5, 4
      %s71 = int_to_ptr.hbm [resolvable:$true] %s70
      %s72 = sshll.u32 [#allocation8], 4
      %s73 = int_to_ptr.vmem [resolvable:$true] %s72
      %75 = dma.hbm_to_vmem [thread:$0]  %s71, 16, %s73, [#allocation9]
    $region25: #{tpu_custom_call.1} parent=1 // pred_fallthru
      _
    // Predicated region
    $region26: #{tpu_custom_call.1} parent=1 // pred_check
      _
    $region27: #{tpu_custom_call.1} parent=1 // pred_check_branch
      %77 = sbr.rel (0) target = $region29
    $region28: #{tpu_custom_call.1} parent=1 // pred_region
      _
    $region29: #{tpu_custom_call.1} parent=1 // pred_fallthru
      _
    // Predicated region
    $region30: #{tpu_custom_call.1} parent=1 // pred_check
      _
    $region31: #{tpu_custom_call.1} parent=1 // pred_check_branch
      %79 = sbr.rel (0) target = $region33
    $region32: #{tpu_custom_call.1} parent=1 // pred_region
      %81 = vsyncadd [#allocation9], 0
      %s82 = sshll.u32 %s7, 4
      %s83 = int_to_ptr.hbm [resolvable:$true] %s82
      %s84 = sshll.u32 [#allocation10], 4
      %s85 = int_to_ptr.vmem [resolvable:$true] %s84
      %90 = dma.hbm_to_vmem [thread:$0]  %s83, 4096, %s85, [#allocation9], 64, 64, 4
    $region33: #{tpu_custom_call.1} parent=1 // pred_fallthru
      _
    // Predicated region
    $region34: #{tpu_custom_call.1} parent=1 // pred_check
      _
    $region35: #{tpu_custom_call.1} parent=1 // pred_check_branch
      %92 = sbr.rel (0) target = $region37
    $region36: #{tpu_custom_call.1} parent=1 // pred_region
      _
    $region37: #{tpu_custom_call.1} parent=1 // pred_fallthru
      _
    // Predicated region
    $region38: #{tpu_custom_call.1} parent=1 // pred_check
      _
    $region39: #{tpu_custom_call.1} parent=1 // pred_check_branch
      %94 = sbr.rel (0) target = $region41
    $region40: #{tpu_custom_call.1} parent=1 // pred_region
      _
    $region41: #{tpu_custom_call.1} parent=1 // pred_fallthru
      _
    // Predicated region
    $region42: #{tpu_custom_call.1} parent=1 // pred_check
      _
    $region43: #{tpu_custom_call.1} parent=1 // pred_check_branch
      %96 = sbr.rel (0) target = $region45
    $region44: #{tpu_custom_call.1} parent=1 // pred_region
      %98 = vsyncadd [#allocation12], 0
      %s99 = sshll.u32 %s10, 4
      %s100 = int_to_ptr.hbm [resolvable:$true] %s99
      %s101 = sshll.u32 [#allocation11], 4
      %s102 = int_to_ptr.vmem [resolvable:$true] %s101
      %107 = dma.hbm_to_vmem [thread:$0]  %s100, 4096, %s102, [#allocation12], 64, 64, 4
    $region45: #{tpu_custom_call.1} parent=1 // pred_fallthru
      _
    // Predicated region
    $region46: #{tpu_custom_call.1} parent=1 // pred_check
      _
    $region47: #{tpu_custom_call.1} parent=1 // pred_check_branch
      %109 = sbr.rel (0) target = $region49
    $region48: #{tpu_custom_call.1} parent=1 // pred_region
      _
    $region49: #{tpu_custom_call.1} parent=1 // pred_fallthru
      _
    // Predicated region
    $region50: #{tpu_custom_call.1} parent=1 // pred_check
      _
    $region51: #{tpu_custom_call.1} parent=1 // pred_check_branch
      %111 = sbr.rel (0) target = $region53
    $region52: #{tpu_custom_call.1} parent=1 // pred_region
      %113 = vsyncadd [#allocation12], 0
      %s114 = sshll.u32 %s12, 4
      %s115 = int_to_ptr.hbm [resolvable:$true] %s114
      %s116 = sshll.u32 [#allocation13], 4
      %s117 = int_to_ptr.vmem [resolvable:$true] %s116
      %122 = dma.hbm_to_vmem [thread:$0]  %s115, 1024, %s117, [#allocation12], 64, 64, 4
    $region53: #{tpu_custom_call.1} parent=1 // pred_fallthru
      _
    // Predicated region
    $region54: #{tpu_custom_call.1} parent=1 // pred_check
      _
    $region55: #{tpu_custom_call.1} parent=1 // pred_check_branch
      %124 = sbr.rel (0) target = $region57
    $region56: #{tpu_custom_call.1} parent=1 // pred_region
      _
    $region57: #{tpu_custom_call.1} parent=1 // pred_fallthru
      _
    // Predicated region
    $region58: #{tpu_custom_call.1} parent=1 // pred_check
      _
    $region59: #{tpu_custom_call.1} parent=1 // pred_check_branch
      %126 = sbr.rel (0) target = $region61
    $region60: #{tpu_custom_call.1} parent=1 // pred_region
      %128 = dma.done [#allocation3], 128
    $region61: #{tpu_custom_call.1} parent=1 // pred_fallthru
      _
    // Predicated region
    $region62: #{tpu_custom_call.1} parent=1 // pred_check
      _
    $region63: #{tpu_custom_call.1} parent=1 // pred_check_branch
      %130 = sbr.rel (0) target = $region65
    $region64: #{tpu_custom_call.1} parent=1 // pred_region
      %132 = dma.done [#allocation6], 16
    $region65: #{tpu_custom_call.1} parent=1 // pred_fallthru
      _
    // Predicated region
    $region66: #{tpu_custom_call.1} parent=1 // pred_check
      _
    $region67: #{tpu_custom_call.1} parent=1 // pred_check_branch
      %134 = sbr.rel (0) target = $region69
    $region68: #{tpu_custom_call.1} parent=1 // pred_region
      %136 = dma.done [#allocation6], 4096
    $region69: #{tpu_custom_call.1} parent=1 // pred_fallthru
      _
    // Predicated region
    $region70: #{tpu_custom_call.1} parent=1 // pred_check
      _
    $region71: #{tpu_custom_call.1} parent=1 // pred_check_branch
      %138 = sbr.rel (0) target = $region73
    $region72: #{tpu_custom_call.1} parent=1 // pred_region
      %140 = dma.done [#allocation9], 16
    $region73: #{tpu_custom_call.1} parent=1 // pred_fallthru
      _
    // Predicated region
    $region74: #{tpu_custom_call.1} parent=1 // pred_check
      _
    $region75: #{tpu_custom_call.1} parent=1 // pred_check_branch
      %142 = sbr.rel (0) target = $region77
    $region76: #{tpu_custom_call.1} parent=1 // pred_region
      %144 = dma.done [#allocation9], 4096
    $region77: #{tpu_custom_call.1} parent=1 // pred_fallthru
      _
    // Predicated region
    $region78: #{tpu_custom_call.1} parent=1 // pred_check
      _
    $region79: #{tpu_custom_call.1} parent=1 // pred_check_branch
      %146 = sbr.rel (0) target = $region81
    $region80: #{tpu_custom_call.1} parent=1 // pred_region
      %148 = dma.done [#allocation12], 4096
    $region81: #{tpu_custom_call.1} parent=1 // pred_fallthru
      _
    // Predicated region
    $region82: #{tpu_custom_call.1} parent=1 // pred_check
      _
    $region83: #{tpu_custom_call.1} parent=1 // pred_check_branch
      %150 = sbr.rel (0) target = $region85
    $region84: #{tpu_custom_call.1} parent=1 // pred_region
      %152 = dma.done [#allocation12], 1024
    $region85: #{tpu_custom_call.1} parent=1 // pred_fallthru
      _
    %v154 = vld [vmem:[%s0] sm:$0xff]
    %v155 = vld [vmem:[%s0 + $0x8] sm:$0xff]
    %v156 = vld [vmem:[%s0 + $0x10] sm:$0xff]
    %v157 = vld [vmem:[%s0 + $0x18] sm:$0xff]
    %v158 = vpack.c.bf16 %v155, %v154
    %v159 = vpack.c.bf16 %v157, %v156
    %v160 = vld [vmem:[#allocation2] sm:$0xf]
    %v161 = vld [vmem:[#allocation2 + $0x4] sm:$0xf]
    %v162 = vld [vmem:[#allocation5] sm:$0x1]
    %v164 = vperm.slane %v162, 0
    %v168 = vunpack.c.l.b16 %v160
    %v169 = vunpack.c.l.b16 %v161
    %v170 = vpack.c.b16 %v169, %v168
    %vm172 = vcmask 130048
    %v174 = vsel %vm172, %v158, 0
    %v177 = vsel %vm172, %v159, 0
    %179 = vmatpush.bf16.msra.mxu0 0
    %180 = vmatpush.bf16.msra.mxu0 0
    %181 = vmatpush.bf16.msra.mxu0 0
    %182 = vmatpush.bf16.msra.mxu0 0
    %183 = vmatpush.bf16.msra.mxu0 0
    %184 = vmatpush.bf16.msra.mxu0 0
    %185 = vmatpush.bf16.msra.mxu0 0
    %186 = vmatpush.bf16.msra.mxu0 %v170
    %187 = vmatmul.bf16.gmra.mxu0 %v174
    %v188 = vpop.f32.mrf.mxu0
    %v189 = vadd.f32 %v164, %v188
    %v190 = vpop.f32.mrf.mxu0
    %v191 = vadd.f32 %v164, %v190
    %192 = vmatmul.bf16.gmra.mxu0 %v177
    %v193 = vpop.f32.mrf.mxu0
    %v194 = vadd.f32 %v164, %v193
    %v195 = vpop.f32.mrf.mxu0
    %v196 = vadd.f32 %v164, %v195
    %197 = vdwg.mxu0
    %v198 = vadd.f32 %v189, %v191
    %v199 = vadd.f32 %v198, %v194
    %v200 = vadd.f32 %v199, %v196
    %v201 = vrot.slane %v200, 4
    %v202 = vadd.f32 %v200, %v201
    %v203 = vrot.slane %v202, 2
    %v204 = vadd.f32 %v202, %v203
    %v205 = vrot.slane %v204, 1
    %v206 = vadd.f32 %v204, %v205
    %v207 = vmul.f32 %v189, %v189
    %v208 = vmul.f32 %v191, %v191
    %v209 = vmul.f32 %v194, %v194
    %v210 = vmul.f32 %v196, %v196
    %v211 = vadd.f32 %v207, %v208
    %v212 = vadd.f32 %v211, %v209
    %v213 = vadd.f32 %v212, %v210
    %v214 = vrot.slane %v213, 4
    %v215 = vadd.f32 %v213, %v214
    %v216 = vrot.slane %v215, 2
    %v217 = vadd.f32 %v215, %v216
    %v218 = vrot.slane %v217, 1
    %v219 = vadd.f32 %v217, %v218
    %v220 = vmul.f32 %v206, 0.03125
    %v221 = vmul.f32 %v219, 0.03125
    %v222 = vmul.f32 %v220, %v220
    %v223 = vsub.f32 %v221, %v222
    %v224 = vadd.f32 %v223, 1e-05
    %v225 = vrsqrt.pop %v224
    %v226 = vmul.f32 %v225, %v224
    %v227 = vmul.f32 %v226, %v225
    %v228 = vmul.f32 0.5, %v227
    %v229 = vsub.f32 1.5, %v228
    %v230 = vmul.f32 %v225, %v229
    %vm231 = vweird.f32 %v224
    %vm232 = vweird.f32 %v225
    %vm233 = vmor %vm231, %vm232
    %v234 = vsel %vm233, %v225, %v230
    %v235 = vsub.f32 %v189, %v220
    %v236 = vsub.f32 %v191, %v220
    %v237 = vsub.f32 %v194, %v220
    %v238 = vsub.f32 %v196, %v220
    %v239 = vmul.f32 %v235, %v234
    %v240 = vmul.f32 %v236, %v234
    %v241 = vmul.f32 %v237, %v234
    %v242 = vmul.f32 %v238, %v234
    %v243 = vmax.f32 %v239, 0.0
    %v244 = vmax.f32 %v240, 0.0
    %v245 = vmax.f32 %v241, 0.0
    %v246 = vmax.f32 %v242, 0.0
    %v247 = vpack.c.bf16 %v244, %v243
    %v248 = vpack.c.bf16 %v246, %v245
    %v249 = vld [vmem:[%s3] sm:$0xf]
    %v250 = vld [vmem:[%s3 + $0x4] sm:$0xf]
    %v253 = vunpack.c.l.b16 %v249
    %v254 = vunpack.c.l.b16 %v250
    %v255 = vpack.c.b16 %v254, %v253
    %vm256 = vcmask 261120
    %v258 = vsel %vm256, %v255, 0
    %260 = vmatpush.bf16.msra.mxu0 0
    %261 = vmatpush.bf16.msra.mxu0 0
    %262 = vmatpush.bf16.msra.mxu0 0
    %263 = vmatpush.bf16.msra.mxu0 0
    %264 = vmatpush.bf16.msra.mxu0 0
    %265 = vmatpush.bf16.msra.mxu0 0
    %266 = vmatpush.bf16.msra.mxu0 %v248
    %267 = vmatpush.bf16.msra.mxu0 %v247
    %268 = vmatmul.bf16.gmra.mxu0 %v258
    %v269 = vpop.f32.mrf.mxu0
    %v270 = vadd.f32 0.0, %v269
    %v271 = vpop.f32.mrf.mxu0
    %v272 = vadd.f32 0.0, %v271
    %273 = vdwg.mxu0
    %v274 = vpack.c.bf16 %v272, %v270
    %v275 = vld [vmem:[#allocation7] sm:$0xf]
    %v276 = vld [vmem:[#allocation7 + $0x4] sm:$0xf]
    %v277 = vld [vmem:[#allocation7 + $0x8] sm:$0xf]
    %v278 = vld [vmem:[#allocation7 + $0xc] sm:$0xf]
    %v279 = vld [vmem:[#allocation7 + $0x10] sm:$0xf]
    %v280 = vld [vmem:[#allocation7 + $0x14] sm:$0xf]
    %v281 = vld [vmem:[#allocation7 + $0x18] sm:$0xf]
    %v282 = vld [vmem:[#allocation7 + $0x1c] sm:$0xf]
    %v283 = vld [vmem:[#allocation7 + $0x20] sm:$0xf]
    %v284 = vld [vmem:[#allocation7 + $0x24] sm:$0xf]
    %v285 = vld [vmem:[#allocation7 + $0x28] sm:$0xf]
    %v286 = vld [vmem:[#allocation7 + $0x2c] sm:$0xf]
    %v287 = vld [vmem:[#allocation7 + $0x30] sm:$0xf]
    %v288 = vld [vmem:[#allocation7 + $0x34] sm:$0xf]
    %v289 = vld [vmem:[#allocation7 + $0x38] sm:$0xf]
    %v290 = vld [vmem:[#allocation7 + $0x3c] sm:$0xf]
    %s291 = scalar_lea.vmem %s3, 8
    %v292 = vld [vmem:[%s291] sm:$0xf]
    %v293 = vld [vmem:[%s291 + $0x4] sm:$0xf]
    %v296 = vunpack.c.l.b16 %v292
    %v297 = vunpack.c.l.b16 %v293
    %v298 = vpack.c.b16 %v297, %v296
    %v300 = vsel %vm256, %v298, 0
    %302 = vmatpush.bf16.msra.mxu0 0
    %303 = vmatpush.bf16.msra.mxu0 0
    %304 = vmatpush.bf16.msra.mxu0 0
    %305 = vmatpush.bf16.msra.mxu0 0
    %306 = vmatpush.bf16.msra.mxu0 0
    %307 = vmatpush.bf16.msra.mxu0 0
    %308 = vmatpush.bf16.msra.mxu0 %v248
    %309 = vmatpush.bf16.msra.mxu0 %v247
    %310 = vmatmul.bf16.gmra.mxu0 %v300
    %v311 = vpop.f32.mrf.mxu0
    %v312 = vadd.f32 0.0, %v311
    %v313 = vpop.f32.mrf.mxu0
    %v314 = vadd.f32 0.0, %v313
    %315 = vdwg.mxu0
    %v316 = vpack.c.bf16 %v314, %v312
    %s317 = scalar_lea.vmem [#allocation7], 64
    %v318 = vld [vmem:[%s317] sm:$0xf]
    %v319 = vld [vmem:[%s317 + $0x4] sm:$0xf]
    %v320 = vld [vmem:[%s317 + $0x8] sm:$0xf]
    %v321 = vld [vmem:[%s317 + $0xc] sm:$0xf]
    %v322 = vld [vmem:[%s317 + $0x10] sm:$0xf]
    %v323 = vld [vmem:[%s317 + $0x14] sm:$0xf]
    %v324 = vld [vmem:[%s317 + $0x18] sm:$0xf]
    %v325 = vld [vmem:[%s317 + $0x1c] sm:$0xf]
    %v326 = vld [vmem:[%s317 + $0x20] sm:$0xf]
    %v327 = vld [vmem:[%s317 + $0x24] sm:$0xf]
    %v328 = vld [vmem:[%s317 + $0x28] sm:$0xf]
    %v329 = vld [vmem:[%s317 + $0x2c] sm:$0xf]
    %v330 = vld [vmem:[%s317 + $0x30] sm:$0xf]
    %v331 = vld [vmem:[%s317 + $0x34] sm:$0xf]
    %v332 = vld [vmem:[%s317 + $0x38] sm:$0xf]
    %v333 = vld [vmem:[%s317 + $0x3c] sm:$0xf]
    %v350 = vunpack.c.l.b16 %v318
    %v351 = vunpack.c.l.b16 %v319
    %v352 = vunpack.c.l.b16 %v320
    %v353 = vunpack.c.l.b16 %v321
    %v354 = vunpack.c.l.b16 %v322
    %v355 = vunpack.c.l.b16 %v323
    %v356 = vunpack.c.l.b16 %v324
    %v357 = vunpack.c.l.b16 %v325
    %v358 = vunpack.c.l.b16 %v326
    %v359 = vunpack.c.l.b16 %v327
    %v360 = vunpack.c.l.b16 %v328
    %v361 = vunpack.c.l.b16 %v329
    %v362 = vunpack.c.l.b16 %v330
    %v363 = vunpack.c.l.b16 %v331
    %v364 = vunpack.c.l.b16 %v332
    %v365 = vunpack.c.l.b16 %v333
    %v366 = vpack.c.b16 %v351, %v350
    %v367 = vpack.c.b16 %v353, %v352
    %v368 = vpack.c.b16 %v355, %v354
    %v369 = vpack.c.b16 %v357, %v356
    %v370 = vpack.c.b16 %v359, %v358
    %v371 = vpack.c.b16 %v361, %v360
    %v372 = vpack.c.b16 %v363, %v362
    %v373 = vpack.c.b16 %v365, %v364
    %382 = vmatpush.bf16.msra.mxu0 %v373
    %383 = vmatpush.bf16.msra.mxu0 %v372
    %384 = vmatpush.bf16.msra.mxu0 %v371
    %385 = vmatpush.bf16.msra.mxu0 %v370
    %386 = vmatpush.bf16.msra.mxu0 %v369
    %387 = vmatpush.bf16.msra.mxu0 %v368
    %388 = vmatpush.bf16.msra.mxu0 %v367
    %389 = vmatpush.bf16.msra.mxu0 %v366
    %390 = vmatmul.bf16.gmra.mxu0 %v316
    %v391 = vpop.f32.mrf.mxu0
    %v392 = vadd.f32 0.0, %v391
    %v393 = vpop.f32.mrf.mxu0
    %v394 = vadd.f32 0.0, %v393
    %395 = vdwg.mxu0
    %v412 = vunpack.c.l.b16 %v275
    %v413 = vunpack.c.l.b16 %v276
    %v414 = vunpack.c.l.b16 %v277
    %v415 = vunpack.c.l.b16 %v278
    %v416 = vunpack.c.l.b16 %v279
    %v417 = vunpack.c.l.b16 %v280
    %v418 = vunpack.c.l.b16 %v281
    %v419 = vunpack.c.l.b16 %v282
    %v420 = vunpack.c.l.b16 %v283
    %v421 = vunpack.c.l.b16 %v284
    %v422 = vunpack.c.l.b16 %v285
    %v423 = vunpack.c.l.b16 %v286
    %v424 = vunpack.c.l.b16 %v287
    %v425 = vunpack.c.l.b16 %v288
    %v426 = vunpack.c.l.b16 %v289
    %v427 = vunpack.c.l.b16 %v290
    %v428 = vpack.c.b16 %v413, %v412
    %v429 = vpack.c.b16 %v415, %v414
    %v430 = vpack.c.b16 %v417, %v416
    %v431 = vpack.c.b16 %v419, %v418
    %v432 = vpack.c.b16 %v421, %v420
    %v433 = vpack.c.b16 %v423, %v422
    %v434 = vpack.c.b16 %v425, %v424
    %v435 = vpack.c.b16 %v427, %v426
    %444 = vmatpush.bf16.msra.mxu0 %v435
    %445 = vmatpush.bf16.msra.mxu0 %v434
    %446 = vmatpush.bf16.msra.mxu0 %v433
    %447 = vmatpush.bf16.msra.mxu0 %v432
    %448 = vmatpush.bf16.msra.mxu0 %v431
    %449 = vmatpush.bf16.msra.mxu0 %v430
    %450 = vmatpush.bf16.msra.mxu0 %v429
    %451 = vmatpush.bf16.msra.mxu0 %v428
    %452 = vmatmul.bf16.gmra.mxu0 %v274
    %v453 = vpop.f32.mrf.mxu0
    %v454 = vadd.f32 %v392, %v453
    %v455 = vpop.f32.mrf.mxu0
    %v456 = vadd.f32 %v394, %v455
    %457 = vdwg.mxu0
    %s458 = scalar_lea.vmem %s3, 16
    %v459 = vld [vmem:[%s458] sm:$0xf]
    %v460 = vld [vmem:[%s458 + $0x4] sm:$0xf]
    %v463 = vunpack.c.l.b16 %v459
    %v464 = vunpack.c.l.b16 %v460
    %v465 = vpack.c.b16 %v464, %v463
    %v467 = vsel %vm256, %v465, 0
    %469 = vmatpush.bf16.msra.mxu0 0
    %470 = vmatpush.bf16.msra.mxu0 0
    %471 = vmatpush.bf16.msra.mxu0 0
    %472 = vmatpush.bf16.msra.mxu0 0
    %473 = vmatpush.bf16.msra.mxu0 0
    %474 = vmatpush.bf16.msra.mxu0 0
    %475 = vmatpush.bf16.msra.mxu0 %v248
    %476 = vmatpush.bf16.msra.mxu0 %v247
    %477 = vmatmul.bf16.gmra.mxu0 %v467
    %v478 = vpop.f32.mrf.mxu0
    %v479 = vadd.f32 0.0, %v478
    %v480 = vpop.f32.mrf.mxu0
    %v481 = vadd.f32 0.0, %v480
    %482 = vdwg.mxu0
    %v483 = vpack.c.bf16 %v481, %v479
    %s484 = scalar_lea.vmem [#allocation7], 128
    %v485 = vld [vmem:[%s484] sm:$0xf]
    %v486 = vld [vmem:[%s484 + $0x4] sm:$0xf]
    %v487 = vld [vmem:[%s484 + $0x8] sm:$0xf]
    %v488 = vld [vmem:[%s484 + $0xc] sm:$0xf]
    %v489 = vld [vmem:[%s484 + $0x10] sm:$0xf]
    %v490 = vld [vmem:[%s484 + $0x14] sm:$0xf]
    %v491 = vld [vmem:[%s484 + $0x18] sm:$0xf]
    %v492 = vld [vmem:[%s484 + $0x1c] sm:$0xf]
    %v493 = vld [vmem:[%s484 + $0x20] sm:$0xf]
    %v494 = vld [vmem:[%s484 + $0x24] sm:$0xf]
    %v495 = vld [vmem:[%s484 + $0x28] sm:$0xf]
    %v496 = vld [vmem:[%s484 + $0x2c] sm:$0xf]
    %v497 = vld [vmem:[%s484 + $0x30] sm:$0xf]
    %v498 = vld [vmem:[%s484 + $0x34] sm:$0xf]
    %v499 = vld [vmem:[%s484 + $0x38] sm:$0xf]
    %v500 = vld [vmem:[%s484 + $0x3c] sm:$0xf]
    %v517 = vunpack.c.l.b16 %v485
    %v518 = vunpack.c.l.b16 %v486
    %v519 = vunpack.c.l.b16 %v487
    %v520 = vunpack.c.l.b16 %v488
    %v521 = vunpack.c.l.b16 %v489
    %v522 = vunpack.c.l.b16 %v490
    %v523 = vunpack.c.l.b16 %v491
    %v524 = vunpack.c.l.b16 %v492
    %v525 = vunpack.c.l.b16 %v493
    %v526 = vunpack.c.l.b16 %v494
    %v527 = vunpack.c.l.b16 %v495
    %v528 = vunpack.c.l.b16 %v496
    %v529 = vunpack.c.l.b16 %v497
    %v530 = vunpack.c.l.b16 %v498
    %v531 = vunpack.c.l.b16 %v499
    %v532 = vunpack.c.l.b16 %v500
    %v533 = vpack.c.b16 %v518, %v517
    %v534 = vpack.c.b16 %v520, %v519
    %v535 = vpack.c.b16 %v522, %v521
    %v536 = vpack.c.b16 %v524, %v523
    %v537 = vpack.c.b16 %v526, %v525
    %v538 = vpack.c.b16 %v528, %v527
    %v539 = vpack.c.b16 %v530, %v529
    %v540 = vpack.c.b16 %v532, %v531
    %549 = vmatpush.bf16.msra.mxu0 %v540
    %550 = vmatpush.bf16.msra.mxu0 %v539
    %551 = vmatpush.bf16.msra.mxu0 %v538
    %552 = vmatpush.bf16.msra.mxu0 %v537
    %553 = vmatpush.bf16.msra.mxu0 %v536
    %554 = vmatpush.bf16.msra.mxu0 %v535
    %555 = vmatpush.bf16.msra.mxu0 %v534
    %556 = vmatpush.bf16.msra.mxu0 %v533
    %557 = vmatmul.bf16.gmra.mxu0 %v483
    %v558 = vpop.f32.mrf.mxu0
    %v559 = vadd.f32 0.0, %v558
    %v560 = vpop.f32.mrf.mxu0
    %v561 = vadd.f32 0.0, %v560
    %562 = vdwg.mxu0
    %v563 = vadd.f32 %v454, %v559
    %v564 = vadd.f32 %v456, %v561
    %s565 = scalar_lea.vmem %s3, 24
    %v566 = vld [vmem:[%s565] sm:$0xf]
    %v567 = vld [vmem:[%s565 + $0x4] sm:$0xf]
    %v570 = vunpack.c.l.b16 %v566
    %v571 = vunpack.c.l.b16 %v567
    %v572 = vpack.c.b16 %v571, %v570
    %v574 = vsel %vm256, %v572, 0
    %576 = vmatpush.bf16.msra.mxu0 0
    %577 = vmatpush.bf16.msra.mxu0 0
    %578 = vmatpush.bf16.msra.mxu0 0
    %579 = vmatpush.bf16.msra.mxu0 0
    %580 = vmatpush.bf16.msra.mxu0 0
    %581 = vmatpush.bf16.msra.mxu0 0
    %582 = vmatpush.bf16.msra.mxu0 %v248
    %583 = vmatpush.bf16.msra.mxu0 %v247
    %584 = vmatmul.bf16.gmra.mxu0 %v574
    %v585 = vpop.f32.mrf.mxu0
    %v586 = vadd.f32 0.0, %v585
    %v587 = vpop.f32.mrf.mxu0
    %v588 = vadd.f32 0.0, %v587
    %589 = vdwg.mxu0
    %v590 = vpack.c.bf16 %v588, %v586
    %s591 = scalar_lea.vmem [#allocation7], 192
    %v592 = vld [vmem:[%s591] sm:$0xf]
    %v593 = vld [vmem:[%s591 + $0x4] sm:$0xf]
    %v594 = vld [vmem:[%s591 + $0x8] sm:$0xf]
    %v595 = vld [vmem:[%s591 + $0xc] sm:$0xf]
    %v596 = vld [vmem:[%s591 + $0x10] sm:$0xf]
    %v597 = vld [vmem:[%s591 + $0x14] sm:$0xf]
    %v598 = vld [vmem:[%s591 + $0x18] sm:$0xf]
    %v599 = vld [vmem:[%s591 + $0x1c] sm:$0xf]
    %v600 = vld [vmem:[%s591 + $0x20] sm:$0xf]
    %v601 = vld [vmem:[%s591 + $0x24] sm:$0xf]
    %v602 = vld [vmem:[%s591 + $0x28] sm:$0xf]
    %v603 = vld [vmem:[%s591 + $0x2c] sm:$0xf]
    %v604 = vld [vmem:[%s591 + $0x30] sm:$0xf]
    %v605 = vld [vmem:[%s591 + $0x34] sm:$0xf]
    %v606 = vld [vmem:[%s591 + $0x38] sm:$0xf]
    %v607 = vld [vmem:[%s591 + $0x3c] sm:$0xf]
    %v624 = vunpack.c.l.b16 %v592
    %v625 = vunpack.c.l.b16 %v593
    %v626 = vunpack.c.l.b16 %v594
    %v627 = vunpack.c.l.b16 %v595
    %v628 = vunpack.c.l.b16 %v596
    %v629 = vunpack.c.l.b16 %v597
    %v630 = vunpack.c.l.b16 %v598
    %v631 = vunpack.c.l.b16 %v599
    %v632 = vunpack.c.l.b16 %v600
    %v633 = vunpack.c.l.b16 %v601
    %v634 = vunpack.c.l.b16 %v602
    %v635 = vunpack.c.l.b16 %v603
    %v636 = vunpack.c.l.b16 %v604
    %v637 = vunpack.c.l.b16 %v605
    %v638 = vunpack.c.l.b16 %v606
    %v639 = vunpack.c.l.b16 %v607
    %v640 = vpack.c.b16 %v625, %v624
    %v641 = vpack.c.b16 %v627, %v626
    %v642 = vpack.c.b16 %v629, %v628
    %v643 = vpack.c.b16 %v631, %v630
    %v644 = vpack.c.b16 %v633, %v632
    %v645 = vpack.c.b16 %v635, %v634
    %v646 = vpack.c.b16 %v637, %v636
    %v647 = vpack.c.b16 %v639, %v638
    %656 = vmatpush.bf16.msra.mxu0 %v647
    %657 = vmatpush.bf16.msra.mxu0 %v646
    %658 = vmatpush.bf16.msra.mxu0 %v645
    %659 = vmatpush.bf16.msra.mxu0 %v644
    %660 = vmatpush.bf16.msra.mxu0 %v643
    %661 = vmatpush.bf16.msra.mxu0 %v642
    %662 = vmatpush.bf16.msra.mxu0 %v641
    %663 = vmatpush.bf16.msra.mxu0 %v640
    %664 = vmatmul.bf16.gmra.mxu0 %v590
    %v665 = vpop.f32.mrf.mxu0
    %v666 = vadd.f32 0.0, %v665
    %v667 = vpop.f32.mrf.mxu0
    %v668 = vadd.f32 0.0, %v667
    %669 = vdwg.mxu0
    %v670 = vadd.f32 %v563, %v666
    %v671 = vadd.f32 %v564, %v668
    %v672 = vld [vmem:[#allocation8] sm:$0x1]
    %v674 = vperm.slane %v672, 0
    %v676 = vadd.f32 %v670, %v674
    %v677 = vadd.f32 %v671, %v674
    %v678 = vadd.f32 %v676, %v677
    %v679 = vrot.slane %v678, 4
    %v680 = vadd.f32 %v678, %v679
    %v681 = vrot.slane %v680, 2
    %v682 = vadd.f32 %v680, %v681
    %v683 = vrot.slane %v682, 1
    %v684 = vadd.f32 %v682, %v683
    %v685 = vmul.f32 %v676, %v676
    %v686 = vmul.f32 %v677, %v677
    %v687 = vadd.f32 %v685, %v686
    %v688 = vrot.slane %v687, 4
    %v689 = vadd.f32 %v687, %v688
    %v690 = vrot.slane %v689, 2
    %v691 = vadd.f32 %v689, %v690
    %v692 = vrot.slane %v691, 1
    %v693 = vadd.f32 %v691, %v692
    %v694 = vmul.f32 %v684, 0.0625
    %v695 = vmul.f32 %v693, 0.0625
    %v696 = vmul.f32 %v694, %v694
    %v697 = vsub.f32 %v695, %v696
    %v698 = vadd.f32 %v697, 1e-05
    %v699 = vrsqrt.pop %v698
    %v700 = vmul.f32 %v699, %v698
    %v701 = vmul.f32 %v700, %v699
    %v702 = vmul.f32 0.5, %v701
    %v703 = vsub.f32 1.5, %v702
    %v704 = vmul.f32 %v699, %v703
    %vm705 = vweird.f32 %v698
    %vm706 = vweird.f32 %v699
    %vm707 = vmor %vm705, %vm706
    %v708 = vsel %vm707, %v699, %v704
    %v709 = vsub.f32 %v676, %v694
    %v710 = vsub.f32 %v677, %v694
    %v711 = vmul.f32 %v709, %v708
    %v712 = vmul.f32 %v710, %v708
    %v713 = vmax.f32 %v711, 0.0
    %v714 = vmax.f32 %v712, 0.0
    %v715 = vpack.c.bf16 %v714, %v713
    %v716 = vld [vmem:[%s6] sm:$0xf]
    %v718 = vsel %vm172, %v716, 0
    %720 = vmatpush.bf16.msra.mxu0 0
    %721 = vmatpush.bf16.msra.mxu0 0
    %722 = vmatpush.bf16.msra.mxu0 0
    %723 = vmatpush.bf16.msra.mxu0 0
    %724 = vmatpush.bf16.msra.mxu0 0
    %725 = vmatpush.bf16.msra.mxu0 0
    %726 = vmatpush.bf16.msra.mxu0 0
    %727 = vmatpush.bf16.msra.mxu0 %v715
    %728 = vmatmul.bf16.gmra.mxu0 %v718
    %v729 = vpop.f32.mrf.mxu0
    %v730 = vadd.f32 0.0, %v729
    %v731 = vpop.f32.mrf.mxu0
    %732 = vdwg.mxu0
    %v733 = vpack.c.bf16 %v730, %v730
    %v734 = vld [vmem:[#allocation10] sm:$0xf]
    %v735 = vld [vmem:[#allocation10 + $0x4] sm:$0xf]
    %v736 = vld [vmem:[#allocation10 + $0x8] sm:$0xf]
    %v737 = vld [vmem:[#allocation10 + $0xc] sm:$0xf]
    %v738 = vld [vmem:[#allocation10 + $0x10] sm:$0xf]
    %v739 = vld [vmem:[#allocation10 + $0x14] sm:$0xf]
    %v740 = vld [vmem:[#allocation10 + $0x18] sm:$0xf]
    %v741 = vld [vmem:[#allocation10 + $0x1c] sm:$0xf]
    %v742 = vld [vmem:[#allocation10 + $0x20] sm:$0xf]
    %v743 = vld [vmem:[#allocation10 + $0x24] sm:$0xf]
    %v744 = vld [vmem:[#allocation10 + $0x28] sm:$0xf]
    %v745 = vld [vmem:[#allocation10 + $0x2c] sm:$0xf]
    %v746 = vld [vmem:[#allocation10 + $0x30] sm:$0xf]
    %v747 = vld [vmem:[#allocation10 + $0x34] sm:$0xf]
    %v748 = vld [vmem:[#allocation10 + $0x38] sm:$0xf]
    %v749 = vld [vmem:[#allocation10 + $0x3c] sm:$0xf]
    %s750 = scalar_lea.vmem %s6, 4
    %v751 = vld [vmem:[%s750] sm:$0xf]
    %v753 = vsel %vm172, %v751, 0
    %755 = vmatpush.bf16.msra.mxu0 0
    %756 = vmatpush.bf16.msra.mxu0 0
    %757 = vmatpush.bf16.msra.mxu0 0
    %758 = vmatpush.bf16.msra.mxu0 0
    %759 = vmatpush.bf16.msra.mxu0 0
    %760 = vmatpush.bf16.msra.mxu0 0
    %761 = vmatpush.bf16.msra.mxu0 0
    %762 = vmatpush.bf16.msra.mxu0 %v715
    %763 = vmatmul.bf16.gmra.mxu0 %v753
    %v764 = vpop.f32.mrf.mxu0
    %v765 = vadd.f32 0.0, %v764
    %v766 = vpop.f32.mrf.mxu0
    %767 = vdwg.mxu0
    %v768 = vpack.c.bf16 %v765, %v765
    %s769 = scalar_lea.vmem [#allocation10], 64
    %v770 = vld [vmem:[%s769] sm:$0xf]
    %v771 = vld [vmem:[%s769 + $0x4] sm:$0xf]
    %v772 = vld [vmem:[%s769 + $0x8] sm:$0xf]
    %v773 = vld [vmem:[%s769 + $0xc] sm:$0xf]
    %v774 = vld [vmem:[%s769 + $0x10] sm:$0xf]
    %v775 = vld [vmem:[%s769 + $0x14] sm:$0xf]
    %v776 = vld [vmem:[%s769 + $0x18] sm:$0xf]
    %v777 = vld [vmem:[%s769 + $0x1c] sm:$0xf]
    %v778 = vld [vmem:[%s769 + $0x20] sm:$0xf]
    %v779 = vld [vmem:[%s769 + $0x24] sm:$0xf]
    %v780 = vld [vmem:[%s769 + $0x28] sm:$0xf]
    %v781 = vld [vmem:[%s769 + $0x2c] sm:$0xf]
    %v782 = vld [vmem:[%s769 + $0x30] sm:$0xf]
    %v783 = vld [vmem:[%s769 + $0x34] sm:$0xf]
    %v784 = vld [vmem:[%s769 + $0x38] sm:$0xf]
    %v785 = vld [vmem:[%s769 + $0x3c] sm:$0xf]
    %v802 = vunpack.c.l.b16 %v770
    %v803 = vunpack.c.l.b16 %v771
    %v804 = vunpack.c.l.b16 %v772
    %v805 = vunpack.c.l.b16 %v773
    %v806 = vunpack.c.l.b16 %v774
    %v807 = vunpack.c.l.b16 %v775
    %v808 = vunpack.c.l.b16 %v776
    %v809 = vunpack.c.l.b16 %v777
    %v810 = vunpack.c.l.b16 %v778
    %v811 = vunpack.c.l.b16 %v779
    %v812 = vunpack.c.l.b16 %v780
    %v813 = vunpack.c.l.b16 %v781
    %v814 = vunpack.c.l.b16 %v782
    %v815 = vunpack.c.l.b16 %v783
    %v816 = vunpack.c.l.b16 %v784
    %v817 = vunpack.c.l.b16 %v785
    %v818 = vpack.c.b16 %v803, %v802
    %v819 = vpack.c.b16 %v805, %v804
    %v820 = vpack.c.b16 %v807, %v806
    %v821 = vpack.c.b16 %v809, %v808
    %v822 = vpack.c.b16 %v811, %v810
    %v823 = vpack.c.b16 %v813, %v812
    %v824 = vpack.c.b16 %v815, %v814
    %v825 = vpack.c.b16 %v817, %v816
    %834 = vmatpush.bf16.msra.mxu0 %v825
    %835 = vmatpush.bf16.msra.mxu0 %v824
    %836 = vmatpush.bf16.msra.mxu0 %v823
    %837 = vmatpush.bf16.msra.mxu0 %v822
    %838 = vmatpush.bf16.msra.mxu0 %v821
    %839 = vmatpush.bf16.msra.mxu0 %v820
    %840 = vmatpush.bf16.msra.mxu0 %v819
    %841 = vmatpush.bf16.msra.mxu0 %v818
    %842 = vmatmul.bf16.gmra.mxu0 %v768
    %v843 = vpop.f32.mrf.mxu0
    %v844 = vadd.f32 0.0, %v843
    %v845 = vpop.f32.mrf.mxu0
    %846 = vdwg.mxu0
    %v863 = vunpack.c.l.b16 %v734
    %v864 = vunpack.c.l.b16 %v735
    %v865 = vunpack.c.l.b16 %v736
    %v866 = vunpack.c.l.b16 %v737
    %v867 = vunpack.c.l.b16 %v738
    %v868 = vunpack.c.l.b16 %v739
    %v869 = vunpack.c.l.b16 %v740
    %v870 = vunpack.c.l.b16 %v741
    %v871 = vunpack.c.l.b16 %v742
    %v872 = vunpack.c.l.b16 %v743
    %v873 = vunpack.c.l.b16 %v744
    %v874 = vunpack.c.l.b16 %v745
    %v875 = vunpack.c.l.b16 %v746
    %v876 = vunpack.c.l.b16 %v747
    %v877 = vunpack.c.l.b16 %v748
    %v878 = vunpack.c.l.b16 %v749
    %v879 = vpack.c.b16 %v864, %v863
    %v880 = vpack.c.b16 %v866, %v865
    %v881 = vpack.c.b16 %v868, %v867
    %v882 = vpack.c.b16 %v870, %v869
    %v883 = vpack.c.b16 %v872, %v871
    %v884 = vpack.c.b16 %v874, %v873
    %v885 = vpack.c.b16 %v876, %v875
    %v886 = vpack.c.b16 %v878, %v877
    %895 = vmatpush.bf16.msra.mxu0 %v886
    %896 = vmatpush.bf16.msra.mxu0 %v885
    %897 = vmatpush.bf16.msra.mxu0 %v884
    %898 = vmatpush.bf16.msra.mxu0 %v883
    %899 = vmatpush.bf16.msra.mxu0 %v882
    %900 = vmatpush.bf16.msra.mxu0 %v881
    %901 = vmatpush.bf16.msra.mxu0 %v880
    %902 = vmatpush.bf16.msra.mxu0 %v879
    %903 = vmatmul.bf16.gmra.mxu0 %v733
    %v904 = vpop.f32.mrf.mxu0
    %v905 = vadd.f32 %v844, %v904
    %v906 = vpop.f32.mrf.mxu0
    %907 = vdwg.mxu0
    %s908 = scalar_lea.vmem %s6, 8
    %v909 = vld [vmem:[%s908] sm:$0xf]
    %v911 = vsel %vm172, %v909, 0
    %913 = vmatpush.bf16.msra.mxu0 0
    %914 = vmatpush.bf16.msra.mxu0 0
    %915 = vmatpush.bf16.msra.mxu0 0
    %916 = vmatpush.bf16.msra.mxu0 0
    %917 = vmatpush.bf16.msra.mxu0 0
    %918 = vmatpush.bf16.msra.mxu0 0
    %919 = vmatpush.bf16.msra.mxu0 0
    %920 = vmatpush.bf16.msra.mxu0 %v715
    %921 = vmatmul.bf16.gmra.mxu0 %v911
    %v922 = vpop.f32.mrf.mxu0
    %v923 = vadd.f32 0.0, %v922
    %v924 = vpop.f32.mrf.mxu0
    %925 = vdwg.mxu0
    %v926 = vpack.c.bf16 %v923, %v923
    %s927 = scalar_lea.vmem [#allocation10], 128
    %v928 = vld [vmem:[%s927] sm:$0xf]
    %v929 = vld [vmem:[%s927 + $0x4] sm:$0xf]
    %v930 = vld [vmem:[%s927 + $0x8] sm:$0xf]
    %v931 = vld [vmem:[%s927 + $0xc] sm:$0xf]
    %v932 = vld [vmem:[%s927 + $0x10] sm:$0xf]
    %v933 = vld [vmem:[%s927 + $0x14] sm:$0xf]
    %v934 = vld [vmem:[%s927 + $0x18] sm:$0xf]
    %v935 = vld [vmem:[%s927 + $0x1c] sm:$0xf]
    %v936 = vld [vmem:[%s927 + $0x20] sm:$0xf]
    %v937 = vld [vmem:[%s927 + $0x24] sm:$0xf]
    %v938 = vld [vmem:[%s927 + $0x28] sm:$0xf]
    %v939 = vld [vmem:[%s927 + $0x2c] sm:$0xf]
    %v940 = vld [vmem:[%s927 + $0x30] sm:$0xf]
    %v941 = vld [vmem:[%s927 + $0x34] sm:$0xf]
    %v942 = vld [vmem:[%s927 + $0x38] sm:$0xf]
    %v943 = vld [vmem:[%s927 + $0x3c] sm:$0xf]
    %v960 = vunpack.c.l.b16 %v928
    %v961 = vunpack.c.l.b16 %v929
    %v962 = vunpack.c.l.b16 %v930
    %v963 = vunpack.c.l.b16 %v931
    %v964 = vunpack.c.l.b16 %v932
    %v965 = vunpack.c.l.b16 %v933
    %v966 = vunpack.c.l.b16 %v934
    %v967 = vunpack.c.l.b16 %v935
    %v968 = vunpack.c.l.b16 %v936
    %v969 = vunpack.c.l.b16 %v937
    %v970 = vunpack.c.l.b16 %v938
    %v971 = vunpack.c.l.b16 %v939
    %v972 = vunpack.c.l.b16 %v940
    %v973 = vunpack.c.l.b16 %v941
    %v974 = vunpack.c.l.b16 %v942
    %v975 = vunpack.c.l.b16 %v943
    %v976 = vpack.c.b16 %v961, %v960
    %v977 = vpack.c.b16 %v963, %v962
    %v978 = vpack.c.b16 %v965, %v964
    %v979 = vpack.c.b16 %v967, %v966
    %v980 = vpack.c.b16 %v969, %v968
    %v981 = vpack.c.b16 %v971, %v970
    %v982 = vpack.c.b16 %v973, %v972
    %v983 = vpack.c.b16 %v975, %v974
    %992 = vmatpush.bf16.msra.mxu0 %v983
    %993 = vmatpush.bf16.msra.mxu0 %v982
    %994 = vmatpush.bf16.msra.mxu0 %v981
    %995 = vmatpush.bf16.msra.mxu0 %v980
    %996 = vmatpush.bf16.msra.mxu0 %v979
    %997 = vmatpush.bf16.msra.mxu0 %v978
    %998 = vmatpush.bf16.msra.mxu0 %v977
    %999 = vmatpush.bf16.msra.mxu0 %v976
    %1000 = vmatmul.bf16.gmra.mxu0 %v926
    %v1001 = vpop.f32.mrf.mxu0
    %v1002 = vadd.f32 0.0, %v1001
    %v1003 = vpop.f32.mrf.mxu0
    %1004 = vdwg.mxu0
    %v1005 = vadd.f32 %v905, %v1002
    %s1006 = scalar_lea.vmem %s6, 12
    %v1007 = vld [vmem:[%s1006] sm:$0xf]
    %v1009 = vsel %vm172, %v1007, 0
    %1011 = vmatpush.bf16.msra.mxu0 0
    %1012 = vmatpush.bf16.msra.mxu0 0
    %1013 = vmatpush.bf16.msra.mxu0 0
    %1014 = vmatpush.bf16.msra.mxu0 0
    %1015 = vmatpush.bf16.msra.mxu0 0
    %1016 = vmatpush.bf16.msra.mxu0 0
    %1017 = vmatpush.bf16.msra.mxu0 0
    %1018 = vmatpush.bf16.msra.mxu0 %v715
    %1019 = vmatmul.bf16.gmra.mxu0 %v1009
    %v1020 = vpop.f32.mrf.mxu0
    %v1021 = vadd.f32 0.0, %v1020
    %v1022 = vpop.f32.mrf.mxu0
    %1023 = vdwg.mxu0
    %v1024 = vpack.c.bf16 %v1021, %v1021
    %s1025 = scalar_lea.vmem [#allocation10], 192
    %v1026 = vld [vmem:[%s1025] sm:$0xf]
    %v1027 = vld [vmem:[%s1025 + $0x4] sm:$0xf]
    %v1028 = vld [vmem:[%s1025 + $0x8] sm:$0xf]
    %v1029 = vld [vmem:[%s1025 + $0xc] sm:$0xf]
    %v1030 = vld [vmem:[%s1025 + $0x10] sm:$0xf]
    %v1031 = vld [vmem:[%s1025 + $0x14] sm:$0xf]
    %v1032 = vld [vmem:[%s1025 + $0x18] sm:$0xf]
    %v1033 = vld [vmem:[%s1025 + $0x1c] sm:$0xf]
    %v1034 = vld [vmem:[%s1025 + $0x20] sm:$0xf]
    %v1035 = vld [vmem:[%s1025 + $0x24] sm:$0xf]
    %v1036 = vld [vmem:[%s1025 + $0x28] sm:$0xf]
    %v1037 = vld [vmem:[%s1025 + $0x2c] sm:$0xf]
    %v1038 = vld [vmem:[%s1025 + $0x30] sm:$0xf]
    %v1039 = vld [vmem:[%s1025 + $0x34] sm:$0xf]
    %v1040 = vld [vmem:[%s1025 + $0x38] sm:$0xf]
    %v1041 = vld [vmem:[%s1025 + $0x3c] sm:$0xf]
    %v1058 = vunpack.c.l.b16 %v1026
    %v1059 = vunpack.c.l.b16 %v1027
    %v1060 = vunpack.c.l.b16 %v1028
    %v1061 = vunpack.c.l.b16 %v1029
    %v1062 = vunpack.c.l.b16 %v1030
    %v1063 = vunpack.c.l.b16 %v1031
    %v1064 = vunpack.c.l.b16 %v1032
    %v1065 = vunpack.c.l.b16 %v1033
    %v1066 = vunpack.c.l.b16 %v1034
    %v1067 = vunpack.c.l.b16 %v1035
    %v1068 = vunpack.c.l.b16 %v1036
    %v1069 = vunpack.c.l.b16 %v1037
    %v1070 = vunpack.c.l.b16 %v1038
    %v1071 = vunpack.c.l.b16 %v1039
    %v1072 = vunpack.c.l.b16 %v1040
    %v1073 = vunpack.c.l.b16 %v1041
    %v1074 = vpack.c.b16 %v1059, %v1058
    %v1075 = vpack.c.b16 %v1061, %v1060
    %v1076 = vpack.c.b16 %v1063, %v1062
    %v1077 = vpack.c.b16 %v1065, %v1064
    %v1078 = vpack.c.b16 %v1067, %v1066
    %v1079 = vpack.c.b16 %v1069, %v1068
    %v1080 = vpack.c.b16 %v1071, %v1070
    %v1081 = vpack.c.b16 %v1073, %v1072
    %1090 = vmatpush.bf16.msra.mxu0 %v1081
    %1091 = vmatpush.bf16.msra.mxu0 %v1080
    %1092 = vmatpush.bf16.msra.mxu0 %v1079
    %1093 = vmatpush.bf16.msra.mxu0 %v1078
    %1094 = vmatpush.bf16.msra.mxu0 %v1077
    %1095 = vmatpush.bf16.msra.mxu0 %v1076
    %1096 = vmatpush.bf16.msra.mxu0 %v1075
    %1097 = vmatpush.bf16.msra.mxu0 %v1074
    %1098 = vmatmul.bf16.gmra.mxu0 %v1024
    %v1099 = vpop.f32.mrf.mxu0
    %v1100 = vadd.f32 0.0, %v1099
    %v1101 = vpop.f32.mrf.mxu0
    %1102 = vdwg.mxu0
    %v1103 = vadd.f32 %v1005, %v1100
    %v1104 = vld [vmem:[%s8] sm:$0x1]
    %v1106 = vperm.slane %v1104, 0
    %v1108 = vadd.f32 %v1103, %v1106
    %v1109 = vrot.slane %v1108, 4
    %v1110 = vadd.f32 %v1108, %v1109
    %v1111 = vrot.slane %v1110, 2
    %v1112 = vadd.f32 %v1110, %v1111
    %v1113 = vrot.slane %v1112, 1
    %v1114 = vadd.f32 %v1112, %v1113
    %v1115 = vmul.f32 %v1108, %v1108
    %v1116 = vrot.slane %v1115, 4
    %v1117 = vadd.f32 %v1115, %v1116
    %v1118 = vrot.slane %v1117, 2
    %v1119 = vadd.f32 %v1117, %v1118
    %v1120 = vrot.slane %v1119, 1
    %v1121 = vadd.f32 %v1119, %v1120
    %v1122 = vmul.f32 %v1114, 0.125
    %v1123 = vmul.f32 %v1121, 0.125
    %v1124 = vmul.f32 %v1122, %v1122
    %v1125 = vsub.f32 %v1123, %v1124
    %v1126 = vadd.f32 %v1125, 1e-05
    %v1127 = vrsqrt.pop %v1126
    %v1128 = vmul.f32 %v1127, %v1126
    %v1129 = vmul.f32 %v1128, %v1127
    %v1130 = vmul.f32 0.5, %v1129
    %v1131 = vsub.f32 1.5, %v1130
    %v1132 = vmul.f32 %v1127, %v1131
    %vm1133 = vweird.f32 %v1126
    %vm1134 = vweird.f32 %v1127
    %vm1135 = vmor %vm1133, %vm1134
    %v1136 = vsel %vm1135, %v1127, %v1132
    %v1137 = vsub.f32 %v1108, %v1122
    %v1138 = vmul.f32 %v1137, %v1136
    %v1139 = vmax.f32 %v1138, 0.0
    %v1140 = vpack.c.bf16 %v1139, %v1139
    %v1141 = vld [vmem:[%s9] sm:$0x1]
    %vm1142 = vcmask 64512
    %v1144 = vsel %vm1142, %v1141, 0
    %vm1146 = vcmask 1043456
    %v1148 = vsel %vm1146, %v1140, 0
    %1150 = vmatpush.bf16.msra.mxu0 0
    %1151 = vmatpush.bf16.msra.mxu0 0
    %1152 = vmatpush.bf16.msra.mxu0 0
    %1153 = vmatpush.bf16.msra.mxu0 0
    %1154 = vmatpush.bf16.msra.mxu0 0
    %1155 = vmatpush.bf16.msra.mxu0 0
    %1156 = vmatpush.bf16.msra.mxu0 0
    %1157 = vmatpush.bf16.msra.mxu0 %v1148
    %1158 = vmatmul.bf16.gmra.mxu0 %v1144
    %v1159 = vpop.f32.mrf.mxu0
    %v1160 = vadd.f32 0.0, %v1159
    %v1161 = vpop.f32.mrf.mxu0
    %1162 = vdwg.mxu0
    %v1163 = vpack.c.bf16 %v1160, %v1160
    %v1164 = vld [vmem:[#allocation11] sm:$0xf]
    %v1165 = vld [vmem:[#allocation11 + $0x4] sm:$0xf]
    %v1166 = vld [vmem:[#allocation11 + $0x8] sm:$0xf]
    %v1167 = vld [vmem:[#allocation11 + $0xc] sm:$0xf]
    %v1168 = vld [vmem:[#allocation11 + $0x10] sm:$0xf]
    %v1169 = vld [vmem:[#allocation11 + $0x14] sm:$0xf]
    %v1170 = vld [vmem:[#allocation11 + $0x18] sm:$0xf]
    %v1171 = vld [vmem:[#allocation11 + $0x1c] sm:$0xf]
    %v1172 = vld [vmem:[#allocation11 + $0x20] sm:$0xf]
    %v1173 = vld [vmem:[#allocation11 + $0x24] sm:$0xf]
    %v1174 = vld [vmem:[#allocation11 + $0x28] sm:$0xf]
    %v1175 = vld [vmem:[#allocation11 + $0x2c] sm:$0xf]
    %v1176 = vld [vmem:[#allocation11 + $0x30] sm:$0xf]
    %v1177 = vld [vmem:[#allocation11 + $0x34] sm:$0xf]
    %v1178 = vld [vmem:[#allocation11 + $0x38] sm:$0xf]
    %v1179 = vld [vmem:[#allocation11 + $0x3c] sm:$0xf]
    %s1180 = scalar_lea.vmem %s9, 1
    %v1181 = vld [vmem:[%s1180] sm:$0x1]
    %v1183 = vsel %vm1142, %v1181, 0
    %1185 = vmatpush.bf16.msra.mxu0 0
    %1186 = vmatpush.bf16.msra.mxu0 0
    %1187 = vmatpush.bf16.msra.mxu0 0
    %1188 = vmatpush.bf16.msra.mxu0 0
    %1189 = vmatpush.bf16.msra.mxu0 0
    %1190 = vmatpush.bf16.msra.mxu0 0
    %1191 = vmatpush.bf16.msra.mxu0 0
    %1192 = vmatpush.bf16.msra.mxu0 %v1148
    %1193 = vmatmul.bf16.gmra.mxu0 %v1183
    %v1194 = vpop.f32.mrf.mxu0
    %v1195 = vadd.f32 0.0, %v1194
    %v1196 = vpop.f32.mrf.mxu0
    %1197 = vdwg.mxu0
    %v1198 = vpack.c.bf16 %v1195, %v1195
    %s1199 = scalar_lea.vmem [#allocation11], 64
    %v1200 = vld [vmem:[%s1199] sm:$0xf]
    %v1201 = vld [vmem:[%s1199 + $0x4] sm:$0xf]
    %v1202 = vld [vmem:[%s1199 + $0x8] sm:$0xf]
    %v1203 = vld [vmem:[%s1199 + $0xc] sm:$0xf]
    %v1204 = vld [vmem:[%s1199 + $0x10] sm:$0xf]
    %v1205 = vld [vmem:[%s1199 + $0x14] sm:$0xf]
    %v1206 = vld [vmem:[%s1199 + $0x18] sm:$0xf]
    %v1207 = vld [vmem:[%s1199 + $0x1c] sm:$0xf]
    %v1208 = vld [vmem:[%s1199 + $0x20] sm:$0xf]
    %v1209 = vld [vmem:[%s1199 + $0x24] sm:$0xf]
    %v1210 = vld [vmem:[%s1199 + $0x28] sm:$0xf]
    %v1211 = vld [vmem:[%s1199 + $0x2c] sm:$0xf]
    %v1212 = vld [vmem:[%s1199 + $0x30] sm:$0xf]
    %v1213 = vld [vmem:[%s1199 + $0x34] sm:$0xf]
    %v1214 = vld [vmem:[%s1199 + $0x38] sm:$0xf]
    %v1215 = vld [vmem:[%s1199 + $0x3c] sm:$0xf]
    %v1232 = vunpack.c.l.b16 %v1200
    %v1233 = vunpack.c.l.b16 %v1201
    %v1234 = vunpack.c.l.b16 %v1202
    %v1235 = vunpack.c.l.b16 %v1203
    %v1236 = vunpack.c.l.b16 %v1204
    %v1237 = vunpack.c.l.b16 %v1205
    %v1238 = vunpack.c.l.b16 %v1206
    %v1239 = vunpack.c.l.b16 %v1207
    %v1240 = vunpack.c.l.b16 %v1208
    %v1241 = vunpack.c.l.b16 %v1209
    %v1242 = vunpack.c.l.b16 %v1210
    %v1243 = vunpack.c.l.b16 %v1211
    %v1244 = vunpack.c.l.b16 %v1212
    %v1245 = vunpack.c.l.b16 %v1213
    %v1246 = vunpack.c.l.b16 %v1214
    %v1247 = vunpack.c.l.b16 %v1215
    %v1248 = vpack.c.b16 %v1233, %v1232
    %v1249 = vpack.c.b16 %v1235, %v1234
    %v1250 = vpack.c.b16 %v1237, %v1236
    %v1251 = vpack.c.b16 %v1239, %v1238
    %v1252 = vpack.c.b16 %v1241, %v1240
    %v1253 = vpack.c.b16 %v1243, %v1242
    %v1254 = vpack.c.b16 %v1245, %v1244
    %v1255 = vpack.c.b16 %v1247, %v1246
    %1264 = vmatpush.bf16.msra.mxu0 %v1255
    %1265 = vmatpush.bf16.msra.mxu0 %v1254
    %1266 = vmatpush.bf16.msra.mxu0 %v1253
    %1267 = vmatpush.bf16.msra.mxu0 %v1252
    %1268 = vmatpush.bf16.msra.mxu0 %v1251
    %1269 = vmatpush.bf16.msra.mxu0 %v1250
    %1270 = vmatpush.bf16.msra.mxu0 %v1249
    %1271 = vmatpush.bf16.msra.mxu0 %v1248
    %1272 = vmatmul.bf16.gmra.mxu0 %v1198
    %v1273 = vpop.f32.mrf.mxu0
    %v1274 = vadd.f32 0.0, %v1273
    %v1275 = vpop.f32.mrf.mxu0
    %1276 = vdwg.mxu0
    %v1293 = vunpack.c.l.b16 %v1164
    %v1294 = vunpack.c.l.b16 %v1165
    %v1295 = vunpack.c.l.b16 %v1166
    %v1296 = vunpack.c.l.b16 %v1167
    %v1297 = vunpack.c.l.b16 %v1168
    %v1298 = vunpack.c.l.b16 %v1169
    %v1299 = vunpack.c.l.b16 %v1170
    %v1300 = vunpack.c.l.b16 %v1171
    %v1301 = vunpack.c.l.b16 %v1172
    %v1302 = vunpack.c.l.b16 %v1173
    %v1303 = vunpack.c.l.b16 %v1174
    %v1304 = vunpack.c.l.b16 %v1175
    %v1305 = vunpack.c.l.b16 %v1176
    %v1306 = vunpack.c.l.b16 %v1177
    %v1307 = vunpack.c.l.b16 %v1178
    %v1308 = vunpack.c.l.b16 %v1179
    %v1309 = vpack.c.b16 %v1294, %v1293
    %v1310 = vpack.c.b16 %v1296, %v1295
    %v1311 = vpack.c.b16 %v1298, %v1297
    %v1312 = vpack.c.b16 %v1300, %v1299
    %v1313 = vpack.c.b16 %v1302, %v1301
    %v1314 = vpack.c.b16 %v1304, %v1303
    %v1315 = vpack.c.b16 %v1306, %v1305
    %v1316 = vpack.c.b16 %v1308, %v1307
    %1325 = vmatpush.bf16.msra.mxu0 %v1316
    %1326 = vmatpush.bf16.msra.mxu0 %v1315
    %1327 = vmatpush.bf16.msra.mxu0 %v1314
    %1328 = vmatpush.bf16.msra.mxu0 %v1313
    %1329 = vmatpush.bf16.msra.mxu0 %v1312
    %1330 = vmatpush.bf16.msra.mxu0 %v1311
    %1331 = vmatpush.bf16.msra.mxu0 %v1310
    %1332 = vmatpush.bf16.msra.mxu0 %v1309
    %1333 = vmatmul.bf16.gmra.mxu0 %v1163
    %v1334 = vpop.f32.mrf.mxu0
    %v1335 = vadd.f32 %v1274, %v1334
    %v1336 = vpop.f32.mrf.mxu0
    %1337 = vdwg.mxu0
    %s1338 = scalar_lea.vmem %s9, 2
    %v1339 = vld [vmem:[%s1338] sm:$0x1]
    %v1341 = vsel %vm1142, %v1339, 0
    %1343 = vmatpush.bf16.msra.mxu0 0
    %1344 = vmatpush.bf16.msra.mxu0 0
    %1345 = vmatpush.bf16.msra.mxu0 0
    %1346 = vmatpush.bf16.msra.mxu0 0
    %1347 = vmatpush.bf16.msra.mxu0 0
    %1348 = vmatpush.bf16.msra.mxu0 0
    %1349 = vmatpush.bf16.msra.mxu0 0
    %1350 = vmatpush.bf16.msra.mxu0 %v1148
    %1351 = vmatmul.bf16.gmra.mxu0 %v1341
    %v1352 = vpop.f32.mrf.mxu0
    %v1353 = vadd.f32 0.0, %v1352
    %v1354 = vpop.f32.mrf.mxu0
    %1355 = vdwg.mxu0
    %v1356 = vpack.c.bf16 %v1353, %v1353
    %s1357 = scalar_lea.vmem [#allocation11], 128
    %v1358 = vld [vmem:[%s1357] sm:$0xf]
    %v1359 = vld [vmem:[%s1357 + $0x4] sm:$0xf]
    %v1360 = vld [vmem:[%s1357 + $0x8] sm:$0xf]
    %v1361 = vld [vmem:[%s1357 + $0xc] sm:$0xf]
    %v1362 = vld [vmem:[%s1357 + $0x10] sm:$0xf]
    %v1363 = vld [vmem:[%s1357 + $0x14] sm:$0xf]
    %v1364 = vld [vmem:[%s1357 + $0x18] sm:$0xf]
    %v1365 = vld [vmem:[%s1357 + $0x1c] sm:$0xf]
    %v1366 = vld [vmem:[%s1357 + $0x20] sm:$0xf]
    %v1367 = vld [vmem:[%s1357 + $0x24] sm:$0xf]
    %v1368 = vld [vmem:[%s1357 + $0x28] sm:$0xf]
    %v1369 = vld [vmem:[%s1357 + $0x2c] sm:$0xf]
    %v1370 = vld [vmem:[%s1357 + $0x30] sm:$0xf]
    %v1371 = vld [vmem:[%s1357 + $0x34] sm:$0xf]
    %v1372 = vld [vmem:[%s1357 + $0x38] sm:$0xf]
    %v1373 = vld [vmem:[%s1357 + $0x3c] sm:$0xf]
    %v1390 = vunpack.c.l.b16 %v1358
    %v1391 = vunpack.c.l.b16 %v1359
    %v1392 = vunpack.c.l.b16 %v1360
    %v1393 = vunpack.c.l.b16 %v1361
    %v1394 = vunpack.c.l.b16 %v1362
    %v1395 = vunpack.c.l.b16 %v1363
    %v1396 = vunpack.c.l.b16 %v1364
    %v1397 = vunpack.c.l.b16 %v1365
    %v1398 = vunpack.c.l.b16 %v1366
    %v1399 = vunpack.c.l.b16 %v1367
    %v1400 = vunpack.c.l.b16 %v1368
    %v1401 = vunpack.c.l.b16 %v1369
    %v1402 = vunpack.c.l.b16 %v1370
    %v1403 = vunpack.c.l.b16 %v1371
    %v1404 = vunpack.c.l.b16 %v1372
    %v1405 = vunpack.c.l.b16 %v1373
    %v1406 = vpack.c.b16 %v1391, %v1390
    %v1407 = vpack.c.b16 %v1393, %v1392
    %v1408 = vpack.c.b16 %v1395, %v1394
    %v1409 = vpack.c.b16 %v1397, %v1396
    %v1410 = vpack.c.b16 %v1399, %v1398
    %v1411 = vpack.c.b16 %v1401, %v1400
    %v1412 = vpack.c.b16 %v1403, %v1402
    %v1413 = vpack.c.b16 %v1405, %v1404
    %1422 = vmatpush.bf16.msra.mxu0 %v1413
    %1423 = vmatpush.bf16.msra.mxu0 %v1412
    %1424 = vmatpush.bf16.msra.mxu0 %v1411
    %1425 = vmatpush.bf16.msra.mxu0 %v1410
    %1426 = vmatpush.bf16.msra.mxu0 %v1409
    %1427 = vmatpush.bf16.msra.mxu0 %v1408
    %1428 = vmatpush.bf16.msra.mxu0 %v1407
    %1429 = vmatpush.bf16.msra.mxu0 %v1406
    %1430 = vmatmul.bf16.gmra.mxu0 %v1356
    %v1431 = vpop.f32.mrf.mxu0
    %v1432 = vadd.f32 0.0, %v1431
    %v1433 = vpop.f32.mrf.mxu0
    %1434 = vdwg.mxu0
    %v1435 = vadd.f32 %v1335, %v1432
    %s1436 = scalar_lea.vmem %s9, 3
    %v1437 = vld [vmem:[%s1436] sm:$0x1]
    %v1439 = vsel %vm1142, %v1437, 0
    %1441 = vmatpush.bf16.msra.mxu0 0
    %1442 = vmatpush.bf16.msra.mxu0 0
    %1443 = vmatpush.bf16.msra.mxu0 0
    %1444 = vmatpush.bf16.msra.mxu0 0
    %1445 = vmatpush.bf16.msra.mxu0 0
    %1446 = vmatpush.bf16.msra.mxu0 0
    %1447 = vmatpush.bf16.msra.mxu0 0
    %1448 = vmatpush.bf16.msra.mxu0 %v1148
    %1449 = vmatmul.bf16.gmra.mxu0 %v1439
    %v1450 = vpop.f32.mrf.mxu0
    %v1451 = vadd.f32 0.0, %v1450
    %v1452 = vpop.f32.mrf.mxu0
    %1453 = vdwg.mxu0
    %v1454 = vpack.c.bf16 %v1451, %v1451
    %s1455 = scalar_lea.vmem [#allocation11], 192
    %v1456 = vld [vmem:[%s1455] sm:$0xf]
    %v1457 = vld [vmem:[%s1455 + $0x4] sm:$0xf]
    %v1458 = vld [vmem:[%s1455 + $0x8] sm:$0xf]
    %v1459 = vld [vmem:[%s1455 + $0xc] sm:$0xf]
    %v1460 = vld [vmem:[%s1455 + $0x10] sm:$0xf]
    %v1461 = vld [vmem:[%s1455 + $0x14] sm:$0xf]
    %v1462 = vld [vmem:[%s1455 + $0x18] sm:$0xf]
    %v1463 = vld [vmem:[%s1455 + $0x1c] sm:$0xf]
    %v1464 = vld [vmem:[%s1455 + $0x20] sm:$0xf]
    %v1465 = vld [vmem:[%s1455 + $0x24] sm:$0xf]
    %v1466 = vld [vmem:[%s1455 + $0x28] sm:$0xf]
    %v1467 = vld [vmem:[%s1455 + $0x2c] sm:$0xf]
    %v1468 = vld [vmem:[%s1455 + $0x30] sm:$0xf]
    %v1469 = vld [vmem:[%s1455 + $0x34] sm:$0xf]
    %v1470 = vld [vmem:[%s1455 + $0x38] sm:$0xf]
    %v1471 = vld [vmem:[%s1455 + $0x3c] sm:$0xf]
    %v1488 = vunpack.c.l.b16 %v1456
    %v1489 = vunpack.c.l.b16 %v1457
    %v1490 = vunpack.c.l.b16 %v1458
    %v1491 = vunpack.c.l.b16 %v1459
    %v1492 = vunpack.c.l.b16 %v1460
    %v1493 = vunpack.c.l.b16 %v1461
    %v1494 = vunpack.c.l.b16 %v1462
    %v1495 = vunpack.c.l.b16 %v1463
    %v1496 = vunpack.c.l.b16 %v1464
    %v1497 = vunpack.c.l.b16 %v1465
    %v1498 = vunpack.c.l.b16 %v1466
    %v1499 = vunpack.c.l.b16 %v1467
    %v1500 = vunpack.c.l.b16 %v1468
    %v1501 = vunpack.c.l.b16 %v1469
    %v1502 = vunpack.c.l.b16 %v1470
    %v1503 = vunpack.c.l.b16 %v1471
    %v1504 = vpack.c.b16 %v1489, %v1488
    %v1505 = vpack.c.b16 %v1491, %v1490
    %v1506 = vpack.c.b16 %v1493, %v1492
    %v1507 = vpack.c.b16 %v1495, %v1494
    %v1508 = vpack.c.b16 %v1497, %v1496
    %v1509 = vpack.c.b16 %v1499, %v1498
    %v1510 = vpack.c.b16 %v1501, %v1500
    %v1511 = vpack.c.b16 %v1503, %v1502
    %1520 = vmatpush.bf16.msra.mxu0 %v1511
    %1521 = vmatpush.bf16.msra.mxu0 %v1510
    %1522 = vmatpush.bf16.msra.mxu0 %v1509
    %1523 = vmatpush.bf16.msra.mxu0 %v1508
    %1524 = vmatpush.bf16.msra.mxu0 %v1507
    %1525 = vmatpush.bf16.msra.mxu0 %v1506
    %1526 = vmatpush.bf16.msra.mxu0 %v1505
    %1527 = vmatpush.bf16.msra.mxu0 %v1504
    %1528 = vmatmul.bf16.gmra.mxu0 %v1454
    %v1529 = vpop.f32.mrf.mxu0
    %v1530 = vadd.f32 0.0, %v1529
    %v1531 = vpop.f32.mrf.mxu0
    %1532 = vdwg.mxu0
    %v1533 = vadd.f32 %v1435, %v1530
    %v1534 = vld [vmem:[%s11] sm:$0x1]
    %v1536 = vperm.slane %v1534, 0
    %v1538 = vadd.f32 %v1533, %v1536
    %vm1539 = vcmask 1041408
    %v1540 = vsel %vm1539, %v1538, 0.0
    %v1541 = vrot.slane %v1540, 4
    %v1542 = vadd.f32 %v1540, %v1541
    %v1543 = vrot.slane %v1542, 2
    %v1544 = vadd.f32 %v1542, %v1543
    %v1545 = vrot.slane %v1544, 1
    %v1546 = vadd.f32 %v1544, %v1545
    %v1547 = vmul.f32 %v1538, %v1538
    %v1548 = vsel %vm1539, %v1547, 0.0
    %v1549 = vrot.slane %v1548, 4
    %v1550 = vadd.f32 %v1548, %v1549
    %v1551 = vrot.slane %v1550, 2
    %v1552 = vadd.f32 %v1550, %v1551
    %v1553 = vrot.slane %v1552, 1
    %v1554 = vadd.f32 %v1552, %v1553
    %v1555 = vmul.f32 %v1546, 0.5
    %v1556 = vmul.f32 %v1554, 0.5
    %v1557 = vmul.f32 %v1555, %v1555
    %v1558 = vsub.f32 %v1556, %v1557
    %v1559 = vadd.f32 %v1558, 1e-05
    %v1560 = vrsqrt.pop %v1559
    %v1561 = vmul.f32 %v1560, %v1559
    %v1562 = vmul.f32 %v1561, %v1560
    %v1563 = vmul.f32 0.5, %v1562
    %v1564 = vsub.f32 1.5, %v1563
    %v1565 = vmul.f32 %v1560, %v1564
    %vm1566 = vweird.f32 %v1559
    %vm1567 = vweird.f32 %v1560
    %vm1568 = vmor %vm1566, %vm1567
    %v1569 = vsel %vm1568, %v1560, %v1565
    %v1570 = vsub.f32 %v1538, %v1555
    %v1571 = vmul.f32 %v1570, %v1569
    %v1572 = vmax.f32 %v1571, 0.0
    %v1573 = vpack.c.bf16 %v1572, %v1572
    %v1574 = vld [vmem:[#allocation13] sm:$0xf]
    %v1575 = vld [vmem:[#allocation13 + $0x4] sm:$0xf]
    %v1576 = vld [vmem:[#allocation13 + $0x8] sm:$0xf]
    %v1577 = vld [vmem:[#allocation13 + $0xc] sm:$0xf]
    %v1578 = vld [vmem:[#allocation13 + $0x10] sm:$0xf]
    %v1579 = vld [vmem:[#allocation13 + $0x14] sm:$0xf]
    %v1580 = vld [vmem:[#allocation13 + $0x18] sm:$0xf]
    %v1581 = vld [vmem:[#allocation13 + $0x1c] sm:$0xf]
    %v1582 = vld [vmem:[#allocation13 + $0x20] sm:$0xf]
    %v1583 = vld [vmem:[#allocation13 + $0x24] sm:$0xf]
    %v1584 = vld [vmem:[#allocation13 + $0x28] sm:$0xf]
    %v1585 = vld [vmem:[#allocation13 + $0x2c] sm:$0xf]
    %v1586 = vld [vmem:[#allocation13 + $0x30] sm:$0xf]
    %v1587 = vld [vmem:[#allocation13 + $0x34] sm:$0xf]
    %v1588 = vld [vmem:[#allocation13 + $0x38] sm:$0xf]
    %v1589 = vld [vmem:[#allocation13 + $0x3c] sm:$0xf]
    %v1590 = vld [vmem:[%s13] sm:$0x1]
    %v1592 = vperm.slane %v1590, 0
    %v1610 = vunpack.c.l.b16 %v1574
    %v1611 = vunpack.c.l.b16 %v1575
    %v1612 = vunpack.c.l.b16 %v1576
    %v1613 = vunpack.c.l.b16 %v1577
    %v1614 = vunpack.c.l.b16 %v1578
    %v1615 = vunpack.c.l.b16 %v1579
    %v1616 = vunpack.c.l.b16 %v1580
    %v1617 = vunpack.c.l.b16 %v1581
    %v1618 = vunpack.c.l.b16 %v1582
    %v1619 = vunpack.c.l.b16 %v1583
    %v1620 = vunpack.c.l.b16 %v1584
    %v1621 = vunpack.c.l.b16 %v1585
    %v1622 = vunpack.c.l.b16 %v1586
    %v1623 = vunpack.c.l.b16 %v1587
    %v1624 = vunpack.c.l.b16 %v1588
    %v1625 = vunpack.c.l.b16 %v1589
    %v1626 = vpack.c.b16 %v1611, %v1610
    %v1627 = vpack.c.b16 %v1613, %v1612
    %v1628 = vpack.c.b16 %v1615, %v1614
    %v1629 = vpack.c.b16 %v1617, %v1616
    %v1630 = vpack.c.b16 %v1619, %v1618
    %v1631 = vpack.c.b16 %v1621, %v1620
    %v1632 = vpack.c.b16 %v1623, %v1622
    %v1633 = vpack.c.b16 %v1625, %v1624
    %1642 = vmatpush.bf16.msra.mxu0 %v1633
    %1643 = vmatpush.bf16.msra.mxu0 %v1632
    %1644 = vmatpush.bf16.msra.mxu0 %v1631
    %1645 = vmatpush.bf16.msra.mxu0 %v1630
    %1646 = vmatpush.bf16.msra.mxu0 %v1629
    %1647 = vmatpush.bf16.msra.mxu0 %v1628
    %1648 = vmatpush.bf16.msra.mxu0 %v1627
    %1649 = vmatpush.bf16.msra.mxu0 %v1626
    %1650 = vmatmul.bf16.gmra.mxu0 %v1573
    %v1651 = vpop.f32.mrf.mxu0
    %v1652 = vadd.f32 %v1592, %v1651
    %v1653 = vpop.f32.mrf.mxu0
    %1654 = vdwg.mxu0
    %1655 = vst [vmem:[#allocation14] sm:$0x3] %v1652
    // Predicated region
    $region86: #{tpu_custom_call.1} parent=1 // pred_check
      _
    $region87: #{tpu_custom_call.1} parent=1 // pred_check_branch
      %1657 = sbr.rel (0) target = $region89
    $region88: #{tpu_custom_call.1} parent=1 // pred_region
      %1659 = vsyncadd [#allocation4], 0
      %s1661 = sshll.u32 [#allocation14], 4
      %s1662 = int_to_ptr.vmem [resolvable:$true] %s1661
      %s1663 = sshll.u32 %s14, 4
      %s1664 = int_to_ptr.hbm [resolvable:$true] %s1663
      %1666 = dma.vmem_to_hbm [thread:$0]  %s1662, 32, %s1664, [#allocation4]
    $region89: #{tpu_custom_call.1} parent=1 // pred_fallthru
      _
    // Predicated region
    $region90: #{tpu_custom_call.1} parent=1 // pred_check
      _
    $region91: #{tpu_custom_call.1} parent=1 // pred_check_branch
      %1668 = sbr.rel (0) target = $region93
    $region92: #{tpu_custom_call.1} parent=1 // pred_region
      %1670 = dma.done [#allocation4], 32
    $region93: #{tpu_custom_call.1} parent=1 // pred_fallthru
      _
    %1671 = vsyncpa [#allocation3], 1
    %1672 = vsyncpa [#allocation6], 1
    %1673 = vsyncpa [#allocation9], 1
    %1674 = vsyncpa [#allocation12], 1
    %1675 = vsyncpa [#allocation4], 1

</llo_original>
